<compile_context>
chip_gen: v7x
topology: tpu7x:2x2x1
jax: 0.10.0
libtpu: 0.0.40
codegen_flags: <defaults>
</compile_context>

<pallas_src>
import math
import functools

import jax
import jax.numpy as jnp
from jax import lax
from jax.experimental import pallas as pl
from jax.experimental.pallas import tpu as pltpu


_LANE = 128


def _round_up(v, m):
    return ((v + m - 1) // m) * m


def _cdiv(a, b):
    return -(-a // b)


# ---------------------------------------------------------------------------
# Hardware-aware budgets / capability probes (cached).
# ---------------------------------------------------------------------------

_VMEM_BUDGETS = None


def _vmem_budgets():
    """(vmem_limit_bytes, block_working_set_budget) derived from the chip's VMEM."""
    global _VMEM_BUDGETS
    if _VMEM_BUDGETS is None:
        try:
            cap = int(pltpu.get_tpu_info().vmem_capacity_bytes)
        except Exception:
            cap = 64 * 1024 * 1024                     # conservative (v7x-sized) default
        limit = min(int(0.70 * cap), 96 * 1024 * 1024)  # ~45 MiB on v7x, ~90 MiB on v5e/v6e
        limit = max(limit, 32 * 1024 * 1024)
        budget = int(0.45 * limit)                      # leave headroom for Mosaic scratch
        _VMEM_BUDGETS = (limit, budget)
    return _VMEM_BUDGETS


_SINGLE_BUFFER_OK = None


def _single_buffer_supported():
    """One-time probe: does pipeline_mode=pl.Buffered(1) compile on this install?

    This is an explicit capability probe on a tiny throwaway kernel, so the real
    kernel never needs a try/except fallback (and real errors are never masked).
    """
    global _SINGLE_BUFFER_OK
    if _SINGLE_BUFFER_OK is not None:
        return _SINGLE_BUFFER_OK
    ok = hasattr(pl, "Buffered")
    if ok:
        try:
            const_spec = pl.BlockSpec((8, 128), lambda i: (0, 0),
                                      pipeline_mode=pl.Buffered(1))

            def _probe(a_ref, c_ref, o_ref):
                o_ref[...] = a_ref[...] + c_ref[...]

            f = pl.pallas_call(
                _probe,
                out_shape=jax.ShapeDtypeStruct((8, 128), jnp.float32),
                grid_spec=pltpu.PrefetchScalarGridSpec(
                    num_scalar_prefetch=0, grid=(1,),
                    in_specs=[pl.BlockSpec((8, 128), lambda i: (0, 0)), const_spec],
                    out_specs=pl.BlockSpec((8, 128), lambda i: (0, 0))),
            )
            z = jnp.zeros((8, 128), jnp.float32)
            jax.block_until_ready(f(z, z))
        except Exception:
            ok = False
    _SINGLE_BUFFER_OK = ok
    return ok


# ---------------------------------------------------------------------------
# Tiling selection.
# ---------------------------------------------------------------------------

def _pick_tiling(n, nfeat, nhid_p, nclass, *, x_bytes, c_bytes, o_bytes,
                 budget, row_mult, single_buffer_weights):
    """Pick (block_n, block_k).  block_k == nfeat means no K (feature) split."""
    w_bufs = 1 if single_buffer_weights else 2

    def working_set(block_n, block_k, split_k):
        if split_k:
            w1_bytes = 2 * block_k * nhid_p * c_bytes          # streamed over K (2 bufs)
        else:
            w1_bytes = w_bufs * nfeat * nhid_p * c_bytes       # resident
        const = (w1_bytes
                 + w_bufs * nhid_p * nclass * c_bytes          # W2 (resident)
                 + w_bufs * (nhid_p + nclass) * 4)             # f32 biases
        per_row = (2 * block_k * x_bytes                       # x tile (double-buffered)
                   + (block_k * c_bytes if c_bytes != x_bytes else 0)  # in-kernel cast copy
                   + nhid_p * 4                                # f32 accumulator scratch
                   + nhid_p * c_bytes                          # cast hidden for 2nd matmul
                   + 2 * nclass * o_bytes                      # out tile (double-buffered)
                   + nclass * 4)                               # f32 logits before cast
        return const + block_n * per_row

    n_rounded = _round_up(n, row_mult)
    # Keep >=4 row-grid steps when n allows (megacore sharding + pipeline overlap),
    # but never force block_n below 256 just to add steps.
    row_cap = min(n_rounded, max(256, _round_up(_cdiv(n, 4), row_mult)))

    target_bn = min(256, n_rounded)
    if working_set(target_bn, nfeat, split_k=False) <= budget:
        split_k, block_k = False, nfeat
    else:
        # Wide-feature path: stream W1 over a K grid axis so block_n does not collapse.
        split_k = True
        bk_cap = min(2048, _round_up(nfeat, _LANE))
        block_k = _LANE
        for cand in range(bk_cap, _LANE - 1, -_LANE):
            if working_set(target_bn, cand, split_k=True) <= budget:
                block_k = cand
                break
        if block_k >= nfeat:
            split_k, block_k = False, nfeat

    candidates = [c for c in (512, 384, 256, 192, 128, 96, 64, 32, 16, 8)
                  if c % row_mult == 0]
    if n_rounded <= 512 and n_rounded not in candidates:
        candidates = sorted(candidates + [n_rounded], reverse=True)

    block_n = row_mult
    for c in candidates:
        if c <= row_cap and working_set(c, block_k, split_k) <= budget:
            block_n = c
            break
    block_n = min(block_n, n_rounded)
    return block_n, block_k


# ---------------------------------------------------------------------------
# Kernel.
# ---------------------------------------------------------------------------

def _pta_mlp_kernel(x_ref, w1_ref, b1_ref, w2_ref, b2_ref, o_ref, acc_ref, *,
                    nfeat, block_k, compute_dtype):
    """Grid = (row blocks, K blocks).  Accumulate x@W1 over K in f32, then
    bias + ReLU + second matmul + bias at the last K step."""
    k = pl.program_id(1)
    nk = pl.num_programs(1)

    @pl.when(k == 0)
    def _init():
        acc_ref[...] = jnp.zeros_like(acc_ref)

    x = x_ref[...]
    if nfeat % block_k != 0:
        # Ragged final K block: out-of-range feature columns hold garbage in VMEM.
        # Zero them so they contribute nothing (W1's padded K rows are zero too).
        valid = nfeat - k * block_k
        col = lax.broadcasted_iota(jnp.int32, x.shape, 1)
        x = jnp.where(col < valid, x, 0)
    x = x.astype(compute_dtype)                      # cast on the VMEM tile (not in HBM)

    acc_ref[...] += jnp.dot(x, w1_ref[...], preferred_element_type=jnp.float32)

    @pl.when(k == nk - 1)
    def _finalize():
        h = acc_ref[...] + b1_ref[...]               # f32 bias add
        h = jnp.maximum(h, 0.0)                      # ReLU in f32 (v5e-friendly)
        h = h.astype(compute_dtype)                  # cast only for the 2nd matmul
        y = jnp.dot(h, w2_ref[...], preferred_element_type=jnp.float32)
        o_ref[...] = (y + b2_ref[...]).astype(o_ref.dtype)


@functools.partial(
    jax.jit,
    static_argnames=("block_n", "block_k", "compute_dtype", "out_dtype",
                     "single_buffer_weights", "vmem_limit"),
)
def _pta_forward_impl(x, w1, b1, w2, b2, *, block_n, block_k, compute_dtype,
                      out_dtype, single_buffer_weights, vmem_limit):
    n, nfeat = x.shape
    nhid = w1.shape[1]
    nclass = w2.shape[1]

    nhid_p = _round_up(nhid, _LANE)
    split_k = block_k < nfeat
    nfeat_w = _round_up(nfeat, block_k)              # W1's K dim (zero-padded if split)
    k_steps = nfeat_w // block_k

    cdt = compute_dtype
    # Weight / bias padding is tiny and numerically inert (zeros); x is NOT copied.
    w1p = jnp.pad(w1.astype(cdt), ((0, nfeat_w - nfeat), (0, nhid_p - nhid)))
    w2p = jnp.pad(w2.astype(cdt), ((0, nhid_p - nhid), (0, 0)))
    b1p = jnp.pad(b1.reshape(1, -1).astype(jnp.float32), ((0, 0), (0, nhid_p - nhid)))
    b2p = b2.reshape(1, -1).astype(jnp.float32)

    grid = (_cdiv(n, block_n), k_steps)

    # Resident weights: single-buffered when supported (reclaims VMEM, esp. v7x).
    w_mode = {"pipeline_mode": pl.Buffered(1)} if single_buffer_weights else {}

    x_spec = pl.BlockSpec((block_n, block_k), lambda i, k: (i, k))
    if split_k:
        w1_spec = pl.BlockSpec((block_k, nhid_p), lambda i, k: (k, 0))   # streamed
    else:
        w1_spec = pl.BlockSpec((block_k, nhid_p), lambda i, k: (0, 0), **w_mode)
    b1_spec = pl.BlockSpec((1, nhid_p), lambda i, k: (0, 0))
    w2_spec = pl.BlockSpec((nhid_p, nclass), lambda i, k: (0, 0), **w_mode)
    b2_spec = pl.BlockSpec((1, nclass), lambda i, k: (0, 0))
    out_spec = pl.BlockSpec((block_n, nclass), lambda i, k: (i, 0))

    cost = pl.CostEstimate(
        flops=2 * n * nfeat * nhid + 2 * n * nhid * nclass,
        transcendentals=0,
        bytes_accessed=(x.size * x.dtype.itemsize
                        + w1p.size * w1p.dtype.itemsize
                        + w2p.size * w2p.dtype.itemsize
                        + b1p.size * 4 + b2p.size * 4
                        + n * nclass * jnp.dtype(out_dtype).itemsize),
    )

    kernel = functools.partial(_pta_mlp_kernel, nfeat=nfeat, block_k=block_k,
                               compute_dtype=cdt)

    return pl.pallas_call(
        kernel,
        out_shape=jax.ShapeDtypeStruct((n, nclass), out_dtype),
        grid_spec=pltpu.PrefetchScalarGridSpec(
            num_scalar_prefetch=0,
            grid=grid,
            in_specs=[x_spec, w1_spec, b1_spec, w2_spec, b2_spec],
            out_specs=out_spec,
            scratch_shapes=[pltpu.VMEM((block_n, nhid_p), jnp.float32)],
        ),
        compiler_params=pltpu.CompilerParams(
            dimension_semantics=("parallel", "arbitrary"),   # rows megacore-shardable
            vmem_limit_bytes=vmem_limit,
        ),
        cost_estimate=cost,
    )(x, w1p, b1p, w2p, b2p)


def pta_forward(x, w1, b1, w2, b2, *, block_n=None, block_k=None,
                compute_dtype=jnp.bfloat16):
    """Fused relu(x @ W1 + b1) @ W2 + b2.

    compute_dtype is the matmul operand dtype (default bf16: native MXU path on
    v6e/v7x; accumulation, bias-add and ReLU stay in f32).  The output keeps
    x.dtype.  Pass compute_dtype=jnp.float32 for full-precision operands.
    """
    n, nfeat = x.shape
    nhid = w1.shape[1]
    nclass = w2.shape[1]

    out_dtype = jnp.dtype(x.dtype)
    compute_dtype = jnp.dtype(compute_dtype)
    nhid_p = _round_up(nhid, _LANE)

    # Row-tile granularity: bf16 packs 2 rows / sublane (16), int8/fp8 pack 4 (32).
    if compute_dtype.itemsize >= 4:
        row_mult = 8
    elif compute_dtype.itemsize == 2:
        row_mult = 16
    else:
        row_mult = 32

    vmem_limit, budget = _vmem_budgets()
    single_buffer = _single_buffer_supported()

    auto_bn, auto_bk = _pick_tiling(
        n, nfeat, nhid_p, nclass,
        x_bytes=jnp.dtype(x.dtype).itemsize,
        c_bytes=compute_dtype.itemsize,
        o_bytes=out_dtype.itemsize,
        budget=budget, row_mult=row_mult,
        single_buffer_weights=single_buffer)

    if block_n is None:
        block_n = auto_bn
    if block_k is None:
        block_k = auto_bk

    block_n = max(row_mult,
                  _round_up(min(int(block_n), _round_up(n, row_mult)), row_mult))
    block_k = int(block_k)
    if block_k >= nfeat:
        block_k = nfeat                               # no K split
    else:
        block_k = max(_LANE, _round_up(block_k, _LANE))
        if block_k >= nfeat:
            block_k = nfeat

    return _pta_forward_impl(
        x, w1, b1, w2, b2,
        block_n=block_n, block_k=block_k,
        compute_dtype=compute_dtype, out_dtype=out_dtype,
        single_buffer_weights=single_buffer, vmem_limit=vmem_limit)


# ---------------------------------------------------------------------------
# Parameter init + pure-JAX reference.
# ---------------------------------------------------------------------------

def init_pta_params(key, nfeat, nhid, nclass, dtype=jnp.float32):
    """Mirrors the module's Linear.reset_parameters().

    Weight stored (in_features, out_features); torch's
    kaiming_uniform_(mode='fan_out', a=sqrt(5)) on that tensor uses
    fan = size(0) = in_features -> bound = 1/sqrt(in_features).
    Bias: uniform(-1/sqrt(out_features), 1/sqrt(out_features)).
    """
    k1, k2, k3, k4 = jax.random.split(key, 4)

    def weight(k, in_f, out_f):
        bound = 1.0 / math.sqrt(in_f)
        return jax.random.uniform(k, (in_f, out_f), dtype, -bound, bound)

    def bias(k, out_f):
        stdv = 1.0 / math.sqrt(out_f)
        return jax.random.uniform(k, (out_f,), dtype, -stdv, stdv)

    return weight(k1, nfeat, nhid), bias(k2, nhid), weight(k3, nhid, nclass), bias(k4, nclass)


def pta_forward_ref(x, w1, b1, w2, b2):
    # Pure-JAX reference of the PyTorch forward (eval mode -> dropout is identity).
    h = jnp.maximum(x @ w1 + b1, 0.0)
    return h @ w2 + b2


# TODO(synk): loss_function (soft-label CE with y_hat_con**exp weighting) and
# inference() (K-step label-propagation post-processing) are training /
# post-processing utilities, not part of forward(); not implemented here.


if __name__ == "__main__":
    key = jax.random.PRNGKey(0)
    kx, kp, kx2, kp2 = jax.random.split(key, 4)

    # Case 1: small graph-MLP shapes, deliberately unaligned (rows / feat / hid /
    # class not tile multiples).  Default bf16 matmul operands, f32 accumulation
    # -> loose tolerance is the intended precision trade.
    N, NFEAT, NHID, NCLASS = 1037, 96, 64, 10
    x = jax.random.normal(kx, (N, NFEAT), jnp.float32)
    w1, b1, w2, b2 = init_pta_params(kp, NFEAT, NHID, NCLASS)
    ref = pta_forward_ref(x, w1, b1, w2, b2)

    out = jax.block_until_ready(pta_forward(x, w1, b1, w2, b2))
    assert out.shape == (N, NCLASS)
    assert jnp.allclose(out, ref, atol=5e-2, rtol=5e-2), "bf16 (default) mismatch"

    # Case 2: f32 operands, explicit small row tile -> multi-step pipelined grid.
    out_f32 = jax.block_until_ready(
        pta_forward(x, w1, b1, w2, b2, block_n=128, compute_dtype=jnp.float32))
    assert jnp.allclose(out_f32, ref, atol=1e-3, rtol=1e-3), "f32 (tiled) mismatch"

    # Case 3: wide-feature path -> K (nfeat) grid axis with streamed W1, an f32
    # accumulator, ragged final K block (masked in-kernel) and ragged row tail.
    N2, NFEAT2 = 517, 1000
    x2 = jax.random.normal(kx2, (N2, NFEAT2), jnp.float32)
    w1b, b1b, w2b, b2b = init_pta_params(kp2, NFEAT2, NHID, NCLASS)
    ref2 = pta_forward_ref(x2, w1b, b1b, w2b, b2b)
    out2 = jax.block_until_ready(
        pta_forward(x2, w1b, b1b, w2b, b2b, block_k=512, compute_dtype=jnp.float32))
    assert out2.shape == (N2, NCLASS)
    assert jnp.allclose(out2, ref2, atol=2e-3, rtol=2e-3), "K-split mismatch"

    print("KERNEL_OK")
</pallas_src>

<mosaic_0001>
module attributes {stable_mosaic.version = 11 : i64} {
  func.func @_probe(%arg0: i32, %arg1: memref<8x128xf32, #tpu.memory_space<vmem>>, %arg2: memref<8x128xf32, #tpu.memory_space<vmem>>, %arg3: memref<8x128xf32, #tpu.memory_space<vmem>>) attributes {dimension_semantics = [#tpu.dimension_semantics<arbitrary>], iteration_bounds = array<i64: 1>, scalar_prefetch = 0 : i64, scratch_operands = 0 : i64, tpu.core_type = #tpu.core_type<tc>, window_params = [{pipeline_mode = #tpu.pipeline_mode<synchronous>, transform_indices = @transform_0, window_bounds = array<i64: 8, 128>}, {pipeline_mode = #tpu.pipeline_mode<synchronous>, transform_indices = @transform_1, window_bounds = array<i64: 8, 128>}, {pipeline_mode = #tpu.pipeline_mode<synchronous>, transform_indices = @transform_2, window_bounds = array<i64: 8, 128>}]} {
    %c0 = arith.constant 0 : index
    %c0_0 = arith.constant 0 : index
    %0 = vector.load %arg1[%c0, %c0_0] : memref<8x128xf32, #tpu.memory_space<vmem>>, vector<8x128xf32>
    %c0_1 = arith.constant 0 : index
    %c0_2 = arith.constant 0 : index
    %1 = vector.load %arg2[%c0_1, %c0_2] : memref<8x128xf32, #tpu.memory_space<vmem>>, vector<8x128xf32>
    %2 = arith.addf %0, %1 : vector<8x128xf32>
    %c0_3 = arith.constant 0 : index
    %c0_4 = arith.constant 0 : index
    %3 = vector.load %arg3[%c0_3, %c0_4] : memref<8x128xf32, #tpu.memory_space<vmem>>, vector<8x128xf32>
    tpu.vector_store %arg3[%c0_3, %c0_4], %2 {strides = array<i32>} : memref<8x128xf32, #tpu.memory_space<vmem>>, vector<8x128xf32>,
    return
  }
  func.func @transform_0(%arg0: i32) -> (i32, i32) {
    %c0_i32 = arith.constant 0 : i32
    %c0_i32_0 = arith.constant 0 : i32
    %c0_i32_1 = arith.constant 0 : i32
    return %c0_i32, %c0_i32_0 : i32, i32
  }
  func.func @transform_1(%arg0: i32) -> (i32, i32) {
    %c0_i32 = arith.constant 0 : i32
    %c0_i32_0 = arith.constant 0 : i32
    %c0_i32_1 = arith.constant 0 : i32
    return %c0_i32, %c0_i32_0 : i32, i32
  }
  func.func @transform_2(%arg0: i32) -> (i32, i32) {
    %c0_i32 = arith.constant 0 : i32
    %c0_i32_0 = arith.constant 0 : i32
    %c0_i32_1 = arith.constant 0 : i32
    return %c0_i32, %c0_i32_0 : i32, i32
  }
}

module attributes {stable_mosaic.version = 11 : i64} {
  func.func @_pta_mlp_kernel(%arg0: i32, %arg1: i32, %arg2: memref<256x96xf32, #tpu.memory_space<vmem>>, %arg3: memref<96x128xbf16, #tpu.memory_space<vmem>>, %arg4: memref<1x128xf32, #tpu.memory_space<vmem>>, %arg5: memref<128x10xbf16, #tpu.memory_space<vmem>>, %arg6: memref<1x10xf32, #tpu.memory_space<vmem>>, %arg7: memref<256x10xf32, #tpu.memory_space<vmem>>, %arg8: memref<256x128xf32, #tpu.memory_space<vmem>>) attributes {dimension_semantics = [#tpu.dimension_semantics<parallel>, #tpu.dimension_semantics<arbitrary>], iteration_bounds = array<i64: 5, 1>, scalar_prefetch = 0 : i64, scratch_operands = 1 : i64, tpu.core_type = #tpu.core_type<tc>, window_params = [{transform_indices = @transform_0, window_bounds = array<i64: 256, 96>}, {pipeline_mode = #tpu.pipeline_mode<synchronous>, transform_indices = @transform_1, window_bounds = array<i64: 96, 128>}, {pipeline_mode = #tpu.pipeline_mode<synchronous>, transform_indices = @transform_2, window_bounds = array<i64: 1, 128>}, {pipeline_mode = #tpu.pipeline_mode<synchronous>, transform_indices = @transform_3, window_bounds = array<i64: 128, 10>}, {pipeline_mode = #tpu.pipeline_mode<synchronous>, transform_indices = @transform_4, window_bounds = array<i64: 1, 10>}, {transform_indices = @transform_5, window_bounds = array<i64: 256, 10>}]} {
    %c0_i32 = arith.constant 0 : i32
    %0 = arith.cmpi eq, %arg1, %c0_i32 : i32
    %1 = arith.extui %0 : i1 to i32
    %c0_i32_0 = arith.constant 0 : i32
    %2 = arith.cmpi ne, %1, %c0_i32_0 : i32
    scf.if %2 {
      %cst_10 = arith.constant 0.000000e+00 : f32
      %13 = vector.broadcast %cst_10 : f32 to vector<256x128xf32>
      %c0_11 = arith.constant 0 : index
      %c0_12 = arith.constant 0 : index
      %14 = vector.load %arg8[%c0_11, %c0_12] : memref<256x128xf32, #tpu.memory_space<vmem>>, vector<256x128xf32>
      tpu.vector_store %arg8[%c0_11, %c0_12], %13 {strides = array<i32>} : memref<256x128xf32, #tpu.memory_space<vmem>>, vector<256x128xf32>,
    } else {
    }
    %c0 = arith.constant 0 : index
    %c0_1 = arith.constant 0 : index
    %3 = vector.load %arg2[%c0, %c0_1] : memref<256x96xf32, #tpu.memory_space<vmem>>, vector<256x96xf32>
    %4 = arith.truncf %3 : vector<256x96xf32> to vector<256x96xbf16>
    %c0_2 = arith.constant 0 : index
    %c0_3 = arith.constant 0 : index
    %5 = vector.load %arg8[%c0_2, %c0_3] : memref<256x128xf32, #tpu.memory_space<vmem>>, vector<256x128xf32>
    %c0_4 = arith.constant 0 : index
    %c0_5 = arith.constant 0 : index
    %6 = vector.load %arg3[%c0_4, %c0_5] : memref<96x128xbf16, #tpu.memory_space<vmem>>, vector<96x128xbf16>
    %cst = arith.constant dense<0.000000e+00> : vector<256x128xf32>
    %7 = tpu.matmul %4, %6, %cst {dimension_numbers = #tpu.dot_dimension_numbers<[1], [0], [0], [1], [0, 0, 1, 1], [], []>} : vector<256x96xbf16>, vector<96x128xbf16>, vector<256x128xf32> -> vector<256x128xf32>
    %8 = arith.addf %5, %7 : vector<256x128xf32>
    %c0_6 = arith.constant 0 : index
    %c0_7 = arith.constant 0 : index
    %9 = vector.load %arg8[%c0_6, %c0_7] : memref<256x128xf32, #tpu.memory_space<vmem>>, vector<256x128xf32>
    tpu.vector_store %arg8[%c0_6, %c0_7], %8 {strides = array<i32>} : memref<256x128xf32, #tpu.memory_space<vmem>>, vector<256x128xf32>,
    %c0_i32_8 = arith.constant 0 : i32
    %10 = arith.cmpi eq, %arg1, %c0_i32_8 : i32
    %11 = arith.extui %10 : i1 to i32
    %c0_i32_9 = arith.constant 0 : i32
    %12 = arith.cmpi ne, %11, %c0_i32_9 : i32
    scf.if %12 {
      %c0_10 = arith.constant 0 : index
      %c0_11 = arith.constant 0 : index
      %13 = vector.load %arg8[%c0_10, %c0_11] : memref<256x128xf32, #tpu.memory_space<vmem>>, vector<256x128xf32>
      %c0_12 = arith.constant 0 : index
      %c0_13 = arith.constant 0 : index
      %14 = vector.load %arg4[%c0_12, %c0_13] : memref<1x128xf32, #tpu.memory_space<vmem>>, vector<1x128xf32>
      %15 = vector.broadcast %14 : vector<1x128xf32> to vector<256x128xf32>
      %16 = arith.addf %13, %15 : vector<256x128xf32>
      %cst_14 = arith.constant 0.000000e+00 : f32
      %17 = vector.broadcast %cst_14 : f32 to vector<256x128xf32>
      %18 = arith.maximumf %16, %17 : vector<256x128xf32>
      %19 = arith.truncf %18 : vector<256x128xf32> to vector<256x128xbf16>
      %c0_15 = arith.constant 0 : index
      %c0_16 = arith.constant 0 : index
      %20 = vector.load %arg5[%c0_15, %c0_16] : memref<128x10xbf16, #tpu.memory_space<vmem>>, vector<128x10xbf16>
      %cst_17 = arith.constant dense<0.000000e+00> : vector<256x10xf32>
      %21 = tpu.matmul %19, %20, %cst_17 {dimension_numbers = #tpu.dot_dimension_numbers<[1], [0], [0], [1], [0, 0, 1, 1], [], []>} : vector<256x128xbf16>, vector<128x10xbf16>, vector<256x10xf32> -> vector<256x10xf32>
      %c0_18 = arith.constant 0 : index
      %c0_19 = arith.constant 0 : index
      %22 = vector.load %arg6[%c0_18, %c0_19] : memref<1x10xf32, #tpu.memory_space<vmem>>, vector<1x10xf32>
      %23 = vector.broadcast %22 : vector<1x10xf32> to vector<256x10xf32>
      %24 = arith.addf %21, %23 : vector<256x10xf32>
      %c0_20 = arith.constant 0 : index
      %c0_21 = arith.constant 0 : index
      %25 = vector.load %arg7[%c0_20, %c0_21] : memref<256x10xf32, #tpu.memory_space<vmem>>, vector<256x10xf32>
      tpu.vector_store %arg7[%c0_20, %c0_21], %24 {strides = array<i32>} : memref<256x10xf32, #tpu.memory_space<vmem>>, vector<256x10xf32>,
    } else {
    }
    return
  }
  func.func @transform_0(%arg0: i32, %arg1: i32) -> (i32, i32) {
    %c0_i32 = arith.constant 0 : i32
    return %arg0, %arg1 : i32, i32
  }
  func.func @transform_1(%arg0: i32, %arg1: i32) -> (i32, i32) {
    %c0_i32 = arith.constant 0 : i32
    %c0_i32_0 = arith.constant 0 : i32
    %c0_i32_1 = arith.constant 0 : i32
    return %c0_i32, %c0_i32_0 : i32, i32
  }
  func.func @transform_2(%arg0: i32, %arg1: i32) -> (i32, i32) {
    %c0_i32 = arith.constant 0 : i32
    %c0_i32_0 = arith.constant 0 : i32
    %c0_i32_1 = arith.constant 0 : i32
    return %c0_i32, %c0_i32_0 : i32, i32
  }
  func.func @transform_3(%arg0: i32, %arg1: i32) -> (i32, i32) {
    %c0_i32 = arith.constant 0 : i32
    %c0_i32_0 = arith.constant 0 : i32
    %c0_i32_1 = arith.constant 0 : i32
    return %c0_i32, %c0_i32_0 : i32, i32
  }
  func.func @transform_4(%arg0: i32, %arg1: i32) -> (i32, i32) {
    %c0_i32 = arith.constant 0 : i32
    %c0_i32_0 = arith.constant 0 : i32
    %c0_i32_1 = arith.constant 0 : i32
    return %c0_i32, %c0_i32_0 : i32, i32
  }
  func.func @transform_5(%arg0: i32, %arg1: i32) -> (i32, i32) {
    %c0_i32 = arith.constant 0 : i32
    %c0_i32_0 = arith.constant 0 : i32
    return %arg0, %c0_i32 : i32, i32
  }
}

</mosaic_0001>

<llo_original>
// kernel: tpu_custom_call.1
$region0: #{tpu_custom_call.1}
  #allocation0 [shape = 'u32[]', space=smem, size = 0x4, offset = 0x4, fixed_abs, tag = 'smem constant byte address 0x4 - core index']
  #allocation1 [shape = 'u32[144,128]{1,0:T(1,128)}', space=vmem, size = 0x12000, scoped, tag = 'internal scratch']
  %s0 = inlined_call_operand.hbm [shape: f32[8,128], index: 0, kind: input, shape index: {}]
  %s1 = inlined_call_operand.hbm [shape: f32[8,128], index: 1, kind: input, shape index: {}]
  %s2 = inlined_call_operand.hbm [shape: f32[8,128], index: 2, kind: output, shape index: {}]
  %s3 = sld [smem:[#allocation0]]
  $region26: #{tpu_custom_call.1} parent=0
    _
  %s5 = ssub.s32 1, %s3
  %s6 = scalar_select 0, %s5, %s3
  $region1: #{tpu_custom_call.1} parent=0
    #allocation2 [shape = 'u8[4096]{0}', space=vmem, size = 0x1000, scoped, tag = 'input window, operand 0, single buffered']
    #allocation3 [shape = 's32[1]{0}', space=sflag, size = 0x4, scoped, tag = 'scoped memory for tpu_custom_call.1']
    #allocation4 [shape = 's32[1]{0}', space=sflag, size = 0x4, scoped, tag = 'scoped memory for tpu_custom_call.1']
    #allocation5 [shape = 'u8[4096]{0}', space=vmem, size = 0x1000, scoped, tag = 'input window, operand 1, single buffered']
    #allocation6 [shape = 's32[1]{0}', space=sflag, size = 0x4, scoped, tag = 'scoped memory for tpu_custom_call.1']
    #allocation7 [shape = 'u8[4096]{0}', space=vmem, size = 0x1000, scoped, tag = 'output window, operand 0, single buffered']
    %7 = vsyncpa [#allocation3], 0
    %8 = vsyncpa [#allocation6], 0
    %9 = vsyncpa [#allocation4], 0
    // Predicated region
    $region2: #{tpu_custom_call.1} parent=1 // pred_check
      _
    $region3: #{tpu_custom_call.1} parent=1 // pred_check_branch
      %11 = sbr.rel (0) target = $region5
    $region4: #{tpu_custom_call.1} parent=1 // pred_region
      %s13 = ssub.s32 128, 128
      %14 = vsyncadd [#allocation3], %s13
      %s16 = sshll.u32 [#allocation2], 4
      %s17 = int_to_ptr.vmem [resolvable:$true] %s16
      %19 = dma.hbm_to_vmem [thread:$0]  %s0, 128, %s17, [#allocation3]
    $region5: #{tpu_custom_call.1} parent=1 // pred_fallthru
      _
    // Predicated region
    $region6: #{tpu_custom_call.1} parent=1 // pred_check
      _
    $region7: #{tpu_custom_call.1} parent=1 // pred_check_branch
      %21 = sbr.rel (0) target = $region9
    $region8: #{tpu_custom_call.1} parent=1 // pred_region
      %s23 = ssub.s32 128, 128
      %24 = vsyncadd [#allocation6], %s23
      %s26 = sshll.u32 [#allocation5], 4
      %s27 = int_to_ptr.vmem [resolvable:$true] %s26
      %29 = dma.hbm_to_vmem [thread:$0]  %s1, 128, %s27, [#allocation6]
    $region9: #{tpu_custom_call.1} parent=1 // pred_fallthru
      _
    // Predicated region
    $region10: #{tpu_custom_call.1} parent=1 // pred_check
      _
    $region11: #{tpu_custom_call.1} parent=1 // pred_check_branch
      %31 = sbr.rel (0) target = $region13
    $region12: #{tpu_custom_call.1} parent=1 // pred_region
      %32 = dma.done [#allocation3], 128
    $region13: #{tpu_custom_call.1} parent=1 // pred_fallthru
      _
    // Predicated region
    $region14: #{tpu_custom_call.1} parent=1 // pred_check
      _
    $region15: #{tpu_custom_call.1} parent=1 // pred_check_branch
      %34 = sbr.rel (0) target = $region17
    $region16: #{tpu_custom_call.1} parent=1 // pred_region
      %35 = dma.done [#allocation6], 128
    $region17: #{tpu_custom_call.1} parent=1 // pred_fallthru
      _
    %v36 = vld [vmem:[#allocation2] sm:$0xff]
    %v37 = vld [vmem:[#allocation5] sm:$0xff]
    %v38 = vadd.f32 %v36, %v37
    %39 = vst [vmem:[#allocation7] sm:$0xff] %v38
    // Predicated region
    $region18: #{tpu_custom_call.1} parent=1 // pred_check
      _
    $region19: #{tpu_custom_call.1} parent=1 // pred_check_branch
      %41 = sbr.rel (0) target = $region21
    $region20: #{tpu_custom_call.1} parent=1 // pred_region
      %s43 = ssub.s32 128, 128
      %44 = vsyncadd [#allocation4], %s43
      %s46 = sshll.u32 [#allocation7], 4
      %s47 = int_to_ptr.vmem [resolvable:$true] %s46
      %49 = dma.vmem_to_hbm [thread:$0]  %s47, 128, %s2, [#allocation4]
    $region21: #{tpu_custom_call.1} parent=1 // pred_fallthru
      _
    // Predicated region
    $region22: #{tpu_custom_call.1} parent=1 // pred_check
      _
    $region23: #{tpu_custom_call.1} parent=1 // pred_check_branch
      %51 = sbr.rel (0) target = $region25
    $region24: #{tpu_custom_call.1} parent=1 // pred_region
      %52 = dma.done [#allocation4], 128
    $region25: #{tpu_custom_call.1} parent=1 // pred_fallthru
      _
    %53 = vsyncpa [#allocation3], 1
    %54 = vsyncpa [#allocation6], 1
    %55 = vsyncpa [#allocation4], 1

// kernel: _pta_forward_impl.1
$region0: #{_pta_forward_impl.1}
  #allocation0 [shape = 'u32[]', space=smem, size = 0x4, offset = 0x4, fixed_abs, tag = 'smem constant byte address 0x4 - core index']
  #allocation1 [shape = 'u32[144,128]{1,0:T(1,128)}', space=vmem, size = 0x12000, scoped, tag = 'internal scratch']
  #allocation2 [shape = 'f32[256,128]{1,0:T(8,128)}', space=vmem, size = 0x20000, scoped, tag = 'scratch operand']
  %s0 = inlined_call_operand.vmem [shape: f32[1037,96], index: 0, kind: input, shape index: {}]
  %s1 = inlined_call_operand.vmem [shape: bf16[96,128], index: 1, kind: input, shape index: {}]
  %s2 = inlined_call_operand.vmem [shape: f32[1,128], index: 2, kind: input, shape index: {}]
  %s3 = inlined_call_operand.vmem [shape: bf16[128,10], index: 3, kind: input, shape index: {}]
  %s4 = inlined_call_operand.vmem [shape: f32[1,10], index: 4, kind: input, shape index: {}]
  %s5 = inlined_call_operand.vmem [shape: f32[1037,10], index: 5, kind: output, shape index: {}]
  %s6 = sld [smem:[#allocation0]]
  $region109: #{_pta_forward_impl.1} parent=0
    _
  %s8 = ssub.s32 1, %s6
  %s9 = scalar_select 0, %s8, %s6
  $region1: #{_pta_forward_impl.1} parent=0
    #allocation3 [shape = 'u8[262144]{0}', space=vmem, size = 0x40000, scoped, tag = 'output window, operand 0']
    loop: start=0, step=1, limit=7
    $region2: #{_pta_forward_impl.1} parent=1 // loop_pre_header
      _
    $region3: #{_pta_forward_impl.1} parent=1 // loop_header
      %s11 = sphi 0, %s15
      %p12 = scmp.ge.s32.totalorder %s11, 7
      %s18 = sphi 0, %s30
      %s19 = sphi 0, %s26
      %s20 = sphi 0, %s18
      %s21 = sphi 0, %s19
      %s22 = sphi 0, %s20
      %s23 = sphi 0, %s21
      %s35 = sphi 0, %s37
      %s38 = sphi 0, %s35
      %s39 = sphi 0, %s38
      %s55 = sphi 0, %s39
      %s59 = sphi 0, %s59
      %s61 = sphi 0, %s59
      %s62 = sphi 0, %s61
      %s76 = sphi 0, %s62
      %s80 = sphi 0, %s80
      %s82 = sphi 0, %s80
      %s83 = sphi 0, %s82
      %s97 = sphi 0, %s83
      %s101 = sphi 0, %s101
      %s103 = sphi 0, %s101
      %s104 = sphi 0, %s103
      %s118 = sphi 0, %s104
      %s122 = sphi 0, %s122
      %s124 = sphi 0, %s122
      %s125 = sphi 0, %s124
      %s139 = sphi 0, %s125
      %s145 = sphi 0, %s147
      %s148 = sphi 0, %s145
      %s149 = sphi 0, %s148
      %s165 = sphi 0, %s149
    $region4: #{_pta_forward_impl.1} parent=1 // loop_header_branch
      %14 = sbr.rel (%p12) target = $region8
    $region5: #{_pta_forward_impl.1} parent=1 // loop_body
      %s16 = ssub.s32 %s11, 1
      %s17 = ssub.s32 %s11, 2
      %s24 = sadd.s32 1, %s19
      %p25 = scmp.ge.s32.totalorder %s24, 1
      %s26 = scalar_select %p25, 0, %s24
      %s27 = sadd.s32 1, %s18
      %s28 = scalar_select %p25, %s27, %s18
      %p29 = scmp.ge.s32.totalorder %s28, 5
      %s30 = scalar_select %p29, 0, %s28
      %s31 = ssub.s32 %s18, %s30
      %s32 = ssub.s32 %s19, %s26
      %s33 = sor.u32 %s31, %s32
      %p34 = scmp.eq.s32.totalorder %s33, 0
      %s36 = sadd.s32 %s35, 1
      %s37 = scalar_select %p34, %s35, %s36
      %p40 = pneg %p34
      %p41 = scmp.eq.s32.totalorder %s11, 4
      %p42 = por %p40, %p41
      %p43 = scmp.ne.s32.totalorder %s35, %s38
      %p44 = scmp.eq.s32.totalorder %s11, 0
      %p45 = por %p43, %p44
      %p46 = scmp.ne.s32.totalorder %s35, %s38
      %p47 = scmp.eq.s32.totalorder %s16, 4
      %p48 = por %p46, %p47
      %p49 = scmp.ne.s32.totalorder %s38, %s39
      %p50 = scmp.eq.s32.totalorder %s16, 0
      %p51 = por %p49, %p50
      %p52 = scmp.ne.s32.totalorder %s38, %s39
      %p53 = scmp.eq.s32.totalorder %s17, 4
      %p54 = por %p52, %p53
      %p56 = scmp.ne.s32.totalorder %s39, %s55
      %p57 = scmp.eq.s32.totalorder %s17, 0
      %p58 = por %p56, %p57
      %s60 = sadd.s32 %s59, 1
      %p63 = scmp.eq.s32.totalorder %s11, 4
      %p64 = scmp.ne.s32.totalorder %s59, %s61
      %p65 = scmp.eq.s32.totalorder %s11, 0
      %p66 = por %p64, %p65
      %p67 = scmp.ne.s32.totalorder %s59, %s61
      %p68 = scmp.eq.s32.totalorder %s16, 4
      %p69 = por %p67, %p68
      %p70 = scmp.ne.s32.totalorder %s61, %s62
      %p71 = scmp.eq.s32.totalorder %s16, 0
      %p72 = por %p70, %p71
      %p73 = scmp.ne.s32.totalorder %s61, %s62
      %p74 = scmp.eq.s32.totalorder %s17, 4
      %p75 = por %p73, %p74
      %p77 = scmp.ne.s32.totalorder %s62, %s76
      %p78 = scmp.eq.s32.totalorder %s17, 0
      %p79 = por %p77, %p78
      %s81 = sadd.s32 %s80, 1
      %p84 = scmp.eq.s32.totalorder %s11, 4
      %p85 = scmp.ne.s32.totalorder %s80, %s82
      %p86 = scmp.eq.s32.totalorder %s11, 0
      %p87 = por %p85, %p86
      %p88 = scmp.ne.s32.totalorder %s80, %s82
      %p89 = scmp.eq.s32.totalorder %s16, 4
      %p90 = por %p88, %p89
      %p91 = scmp.ne.s32.totalorder %s82, %s83
      %p92 = scmp.eq.s32.totalorder %s16, 0
      %p93 = por %p91, %p92
      %p94 = scmp.ne.s32.totalorder %s82, %s83
      %p95 = scmp.eq.s32.totalorder %s17, 4
      %p96 = por %p94, %p95
      %p98 = scmp.ne.s32.totalorder %s83, %s97
      %p99 = scmp.eq.s32.totalorder %s17, 0
      %p100 = por %p98, %p99
      %s102 = sadd.s32 %s101, 1
      %p105 = scmp.eq.s32.totalorder %s11, 4
      %p106 = scmp.ne.s32.totalorder %s101, %s103
      %p107 = scmp.eq.s32.totalorder %s11, 0
      %p108 = por %p106, %p107
      %p109 = scmp.ne.s32.totalorder %s101, %s103
      %p110 = scmp.eq.s32.totalorder %s16, 4
      %p111 = por %p109, %p110
      %p112 = scmp.ne.s32.totalorder %s103, %s104
      %p113 = scmp.eq.s32.totalorder %s16, 0
      %p114 = por %p112, %p113
      %p115 = scmp.ne.s32.totalorder %s103, %s104
      %p116 = scmp.eq.s32.totalorder %s17, 4
      %p117 = por %p115, %p116
      %p119 = scmp.ne.s32.totalorder %s104, %s118
      %p120 = scmp.eq.s32.totalorder %s17, 0
      %p121 = por %p119, %p120
      %s123 = sadd.s32 %s122, 1
      %p126 = scmp.eq.s32.totalorder %s11, 4
      %p127 = scmp.ne.s32.totalorder %s122, %s124
      %p128 = scmp.eq.s32.totalorder %s11, 0
      %p129 = por %p127, %p128
      %p130 = scmp.ne.s32.totalorder %s122, %s124
      %p131 = scmp.eq.s32.totalorder %s16, 4
      %p132 = por %p130, %p131
      %p133 = scmp.ne.s32.totalorder %s124, %s125
      %p134 = scmp.eq.s32.totalorder %s16, 0
      %p135 = por %p133, %p134
      %p136 = scmp.ne.s32.totalorder %s124, %s125
      %p137 = scmp.eq.s32.totalorder %s17, 4
      %p138 = por %p136, %p137
      %p140 = scmp.ne.s32.totalorder %s125, %s139
      %p141 = scmp.eq.s32.totalorder %s17, 0
      %p142 = por %p140, %p141
      %s143 = ssub.s32 %s18, %s30
      %p144 = scmp.eq.s32.totalorder %s143, 0
      %s146 = sadd.s32 %s145, 1
      %s147 = scalar_select %p144, %s145, %s146
      %p150 = pneg %p144
      %p151 = scmp.eq.s32.totalorder %s11, 4
      %p152 = por %p150, %p151
      %p153 = scmp.ne.s32.totalorder %s145, %s148
      %p154 = scmp.eq.s32.totalorder %s11, 0
      %p155 = por %p153, %p154
      %p156 = scmp.ne.s32.totalorder %s145, %s148
      %p157 = scmp.eq.s32.totalorder %s16, 4
      %p158 = por %p156, %p157
      %p159 = scmp.ne.s32.totalorder %s148, %s149
      %p160 = scmp.eq.s32.totalorder %s16, 0
      %p161 = por %p159, %p160
      %p162 = scmp.ne.s32.totalorder %s148, %s149
      %p163 = scmp.eq.s32.totalorder %s17, 4
      %p164 = por %p162, %p163
      %p166 = scmp.ne.s32.totalorder %s149, %s165
      %p167 = scmp.eq.s32.totalorder %s17, 0
      %p168 = por %p166, %p167
      %p169 = scmp.le.s32.totalorder 1, %s11
      %p170 = scmp.lt.s32.totalorder %s11, 6
      %p171 = pnand %p169, %p170
      %p172 = pneg %p171
      // Predicated region
      $region9: #{_pta_forward_impl.1} parent=5 // pred_check
        _
      $region10: #{_pta_forward_impl.1} parent=5 // pred_check_branch
        %174 = sbr.rel (%p171) target = $region12
      $region11: #{_pta_forward_impl.1} parent=5 // pred_region
        %s175 = ssub.s32 %s11, 1
        // Predicated region
        $region13: #{_pta_forward_impl.1} parent=11 // pred_check
          %p176 = pneg %p72
        $region14: #{_pta_forward_impl.1} parent=11 // pred_check_branch
          %178 = sbr.rel (%p176) target = $region16
        $region15: #{_pta_forward_impl.1} parent=11 // pred_region
          _
        $region16: #{_pta_forward_impl.1} parent=11 // pred_fallthru
          _
        // Predicated region
        $region17: #{_pta_forward_impl.1} parent=11 // pred_check
          %p179 = pneg %p93
        $region18: #{_pta_forward_impl.1} parent=11 // pred_check_branch
          %181 = sbr.rel (%p179) target = $region20
        $region19: #{_pta_forward_impl.1} parent=11 // pred_region
          _
        $region20: #{_pta_forward_impl.1} parent=11 // pred_fallthru
          _
        // Predicated region
        $region21: #{_pta_forward_impl.1} parent=11 // pred_check
          %p182 = pneg %p114
        $region22: #{_pta_forward_impl.1} parent=11 // pred_check_branch
          %184 = sbr.rel (%p182) target = $region24
        $region23: #{_pta_forward_impl.1} parent=11 // pred_region
          _
        $region24: #{_pta_forward_impl.1} parent=11 // pred_fallthru
          _
        // Predicated region
        $region25: #{_pta_forward_impl.1} parent=11 // pred_check
          %p185 = pneg %p135
        $region26: #{_pta_forward_impl.1} parent=11 // pred_check_branch
          %187 = sbr.rel (%p185) target = $region28
        $region27: #{_pta_forward_impl.1} parent=11 // pred_region
          _
        $region28: #{_pta_forward_impl.1} parent=11 // pred_fallthru
          _
      $region12: #{_pta_forward_impl.1} parent=5 // pred_fallthru
        _
      %p188 = scmp.lt.s32.totalorder %s11, 5
      // Predicated region
      $region29: #{_pta_forward_impl.1} parent=5 // pred_check
        %p189 = pneg %p188
      $region30: #{_pta_forward_impl.1} parent=5 // pred_check_branch
        %191 = sbr.rel (%p189) target = $region32
      $region31: #{_pta_forward_impl.1} parent=5 // pred_region
        // Predicated region
        $region33: #{_pta_forward_impl.1} parent=31 // pred_check
          %p192 = pneg %p45
        $region34: #{_pta_forward_impl.1} parent=31 // pred_check_branch
          %194 = sbr.rel (%p192) target = $region36
        $region35: #{_pta_forward_impl.1} parent=31 // pred_region
          %s195 = smul.u32 32, %s18
          %s196 = ssub.s32 130, %s195
          %p197 = scmp.lt.s32.totalorder %s196, 32
          %s198 = scalar_select %p197, %s196, 32
          %s199 = smul.u32 128, %s198
          %p200 = scmp.lt.s32.totalorder %s195, 129
          %s201 = scalar_select %p200, %s195, 129
          %p202 = scmp.lt.s32.totalorder %s19, 0
          %s203 = scalar_select %p202, %s19, 0
          %s204 = sadd.s32 %s203, %s201
          %s205 = smul.addr %s204, 8
          %s206 = scalar_lea.vmem %s0, %s205
          %s207 = smul.u32 32, %s18
          %s208 = ssub.s32 130, %s207
          %p209 = scmp.lt.s32.totalorder %s208, 32
          %s210 = scalar_select %p209, %s208, 32
          %s211 = smul.u32 128, %s210
        $region36: #{_pta_forward_impl.1} parent=31 // pred_fallthru
          _
      $region32: #{_pta_forward_impl.1} parent=5 // pred_fallthru
        _
      %p212 = scmp.le.s32.totalorder 1, %s11
      %p213 = scmp.lt.s32.totalorder %s11, 6
      %p214 = pnand %p212, %p213
      %p215 = pneg %p214
      // Predicated region
      $region37: #{_pta_forward_impl.1} parent=5 // pred_check
        _
      $region38: #{_pta_forward_impl.1} parent=5 // pred_check_branch
        %217 = sbr.rel (%p214) target = $region40
      $region39: #{_pta_forward_impl.1} parent=5 // pred_region
        %s218 = ssub.s32 %s11, 1
        %s219 = smul.u32 32, %s20
        %s220 = ssub.s32 130, %s219
        %p221 = scmp.lt.s32.totalorder %s220, 32
        %s222 = scalar_select %p221, %s220, 32
        %s223 = smul.u32 128, %s222
        %p224 = scmp.lt.s32.totalorder %s219, 129
        %s225 = scalar_select %p224, %s219, 129
        %p226 = scmp.lt.s32.totalorder %s21, 0
        %s227 = scalar_select %p226, %s21, 0
        %s228 = sadd.s32 %s227, %s225
        %s229 = smul.addr %s228, 8
        %s230 = scalar_lea.vmem %s0, %s229
        %p231 = pneg %p51
        %p232 = pneg %p48
        %p233 = pneg %p72
        %p234 = pneg %p69
        %p235 = pneg %p93
        %p236 = pneg %p90
        %p237 = pneg %p114
        %p238 = pneg %p111
        %p239 = pneg %p135
        %p240 = pneg %p132
        %p241 = pneg %p161
        %p242 = pneg %p158
        %s243 = sand.u32 %s148, 1
        %s244 = sand.u32 %s148, 1
        %s245 = smul.addr %s244, 256
        %s246 = scalar_lea.vmem [#allocation3], %s245
        %s247 = smul.u32 32, %s20
        %s248 = ssub.s32 130, %s247
        %p249 = scmp.lt.s32.totalorder %s248, 32
        %s250 = scalar_select %p249, %s248, 32
        %s251 = smul.u32 128, %s250
        %p252 = scmp.lt.s32.totalorder %s247, 129
        %s253 = scalar_select %p252, %s247, 129
        %p254 = scmp.lt.s32.totalorder %s21, 0
        %s255 = scalar_select %p254, %s21, 0
        %s256 = sadd.s32 %s255, %s253
        %s257 = smul.addr %s256, 8
        %s258 = scalar_lea.vmem %s0, %s257
        %s259 = smul.u32 32, %s20
        %s260 = ssub.s32 130, %s259
        %p261 = scmp.lt.s32.totalorder %s260, 32
        %s262 = scalar_select %p261, %s260, 32
        %s263 = smul.u32 128, %s262
        %s264 = smul.u32 32, %s20
        %s265 = ssub.s32 130, %s264
        %p266 = scmp.lt.s32.totalorder %s265, 32
        %s267 = scalar_select %p266, %s265, 32
        %s268 = smul.u32 128, %s267
        %p270 = scmp.eq.s32.totalorder %s21, 0
        // Predicated region
        $region41: #{_pta_forward_impl.1} parent=39 // pred_check
          %p271 = pneg %p270
        $region42: #{_pta_forward_impl.1} parent=39 // pred_check_branch
          %273 = sbr.rel (%p271) target = $region44
        $region43: #{_pta_forward_impl.1} parent=39 // pred_region
          %274 = vst [vmem:[#allocation2] sm:$0xff] 0.0
          %275 = vst [vmem:[#allocation2 + $0x8] sm:$0xff] 0.0
          %276 = vst [vmem:[#allocation2 + $0x10] sm:$0xff] 0.0
          %277 = vst [vmem:[#allocation2 + $0x18] sm:$0xff] 0.0
          %278 = vst [vmem:[#allocation2 + $0x20] sm:$0xff] 0.0
          %279 = vst [vmem:[#allocation2 + $0x28] sm:$0xff] 0.0
          %280 = vst [vmem:[#allocation2 + $0x30] sm:$0xff] 0.0
          %281 = vst [vmem:[#allocation2 + $0x38] sm:$0xff] 0.0
          %282 = vst [vmem:[#allocation2 + $0x40] sm:$0xff] 0.0
          %283 = vst [vmem:[#allocation2 + $0x48] sm:$0xff] 0.0
          %284 = vst [vmem:[#allocation2 + $0x50] sm:$0xff] 0.0
          %285 = vst [vmem:[#allocation2 + $0x58] sm:$0xff] 0.0
          %286 = vst [vmem:[#allocation2 + $0x60] sm:$0xff] 0.0
          %287 = vst [vmem:[#allocation2 + $0x68] sm:$0xff] 0.0
          %288 = vst [vmem:[#allocation2 + $0x70] sm:$0xff] 0.0
          %289 = vst [vmem:[#allocation2 + $0x78] sm:$0xff] 0.0
          %290 = vst [vmem:[#allocation2 + $0x80] sm:$0xff] 0.0
          %291 = vst [vmem:[#allocation2 + $0x88] sm:$0xff] 0.0
          %292 = vst [vmem:[#allocation2 + $0x90] sm:$0xff] 0.0
          %293 = vst [vmem:[#allocation2 + $0x98] sm:$0xff] 0.0
          %294 = vst [vmem:[#allocation2 + $0xa0] sm:$0xff] 0.0
          %295 = vst [vmem:[#allocation2 + $0xa8] sm:$0xff] 0.0
          %296 = vst [vmem:[#allocation2 + $0xb0] sm:$0xff] 0.0
          %297 = vst [vmem:[#allocation2 + $0xb8] sm:$0xff] 0.0
          %298 = vst [vmem:[#allocation2 + $0xc0] sm:$0xff] 0.0
          %299 = vst [vmem:[#allocation2 + $0xc8] sm:$0xff] 0.0
          %300 = vst [vmem:[#allocation2 + $0xd0] sm:$0xff] 0.0
          %301 = vst [vmem:[#allocation2 + $0xd8] sm:$0xff] 0.0
          %302 = vst [vmem:[#allocation2 + $0xe0] sm:$0xff] 0.0
          %303 = vst [vmem:[#allocation2 + $0xe8] sm:$0xff] 0.0
          %304 = vst [vmem:[#allocation2 + $0xf0] sm:$0xff] 0.0
          %305 = vst [vmem:[#allocation2 + $0xf8] sm:$0xff] 0.0
        $region44: #{_pta_forward_impl.1} parent=39 // pred_fallthru
          _
        %v306 = vld [vmem:[%s258] sm:$0xff]
        %v307 = vld [vmem:[%s258 + $0x8] sm:$0xff]
        %v308 = vld [vmem:[%s258 + $0x10] sm:$0xff]
        %v309 = vld [vmem:[%s258 + $0x18] sm:$0xff]
        %v310 = vld [vmem:[%s258 + $0x20] sm:$0xff]
        %v311 = vld [vmem:[%s258 + $0x28] sm:$0xff]
        %v312 = vld [vmem:[%s258 + $0x30] sm:$0xff]
        %v313 = vld [vmem:[%s258 + $0x38] sm:$0xff]
        %v314 = vld [vmem:[%s258 + $0x40] sm:$0xff]
        %v315 = vld [vmem:[%s258 + $0x48] sm:$0xff]
        %v316 = vld [vmem:[%s258 + $0x50] sm:$0xff]
        %v317 = vld [vmem:[%s258 + $0x58] sm:$0xff]
        %v318 = vld [vmem:[%s258 + $0x60] sm:$0xff]
        %v319 = vld [vmem:[%s258 + $0x68] sm:$0xff]
        %v320 = vld [vmem:[%s258 + $0x70] sm:$0xff]
        %v321 = vld [vmem:[%s258 + $0x78] sm:$0xff]
        %v322 = vld [vmem:[%s258 + $0x80] sm:$0xff]
        %v323 = vld [vmem:[%s258 + $0x88] sm:$0xff]
        %v324 = vld [vmem:[%s258 + $0x90] sm:$0xff]
        %v325 = vld [vmem:[%s258 + $0x98] sm:$0xff]
        %v326 = vld [vmem:[%s258 + $0xa0] sm:$0xff]
        %v327 = vld [vmem:[%s258 + $0xa8] sm:$0xff]
        %v328 = vld [vmem:[%s258 + $0xb0] sm:$0xff]
        %v329 = vld [vmem:[%s258 + $0xb8] sm:$0xff]
        %v330 = vld [vmem:[%s258 + $0xc0] sm:$0xff]
        %v331 = vld [vmem:[%s258 + $0xc8] sm:$0xff]
        %v332 = vld [vmem:[%s258 + $0xd0] sm:$0xff]
        %v333 = vld [vmem:[%s258 + $0xd8] sm:$0xff]
        %v334 = vld [vmem:[%s258 + $0xe0] sm:$0xff]
        %v335 = vld [vmem:[%s258 + $0xe8] sm:$0xff]
        %v336 = vld [vmem:[%s258 + $0xf0] sm:$0xff]
        %v337 = vld [vmem:[%s258 + $0xf8] sm:$0xff]
        %v338 = vpack.c.bf16 %v307, %v306
        %v339 = vpack.c.bf16 %v309, %v308
        %v340 = vpack.c.bf16 %v311, %v310
        %v341 = vpack.c.bf16 %v313, %v312
        %v342 = vpack.c.bf16 %v315, %v314
        %v343 = vpack.c.bf16 %v317, %v316
        %v344 = vpack.c.bf16 %v319, %v318
        %v345 = vpack.c.bf16 %v321, %v320
        %v346 = vpack.c.bf16 %v323, %v322
        %v347 = vpack.c.bf16 %v325, %v324
        %v348 = vpack.c.bf16 %v327, %v326
        %v349 = vpack.c.bf16 %v329, %v328
        %v350 = vpack.c.bf16 %v331, %v330
        %v351 = vpack.c.bf16 %v333, %v332
        %v352 = vpack.c.bf16 %v335, %v334
        %v353 = vpack.c.bf16 %v337, %v336
        %v354 = vld [vmem:[#allocation2] sm:$0xff]
        %v355 = vld [vmem:[#allocation2 + $0x8] sm:$0xff]
        %v356 = vld [vmem:[#allocation2 + $0x10] sm:$0xff]
        %v357 = vld [vmem:[#allocation2 + $0x18] sm:$0xff]
        %v358 = vld [vmem:[#allocation2 + $0x20] sm:$0xff]
        %v359 = vld [vmem:[#allocation2 + $0x28] sm:$0xff]
        %v360 = vld [vmem:[#allocation2 + $0x30] sm:$0xff]
        %v361 = vld [vmem:[#allocation2 + $0x38] sm:$0xff]
        %v362 = vld [vmem:[#allocation2 + $0x40] sm:$0xff]
        %v363 = vld [vmem:[#allocation2 + $0x48] sm:$0xff]
        %v364 = vld [vmem:[#allocation2 + $0x50] sm:$0xff]
        %v365 = vld [vmem:[#allocation2 + $0x58] sm:$0xff]
        %v366 = vld [vmem:[#allocation2 + $0x60] sm:$0xff]
        %v367 = vld [vmem:[#allocation2 + $0x68] sm:$0xff]
        %v368 = vld [vmem:[#allocation2 + $0x70] sm:$0xff]
        %v369 = vld [vmem:[#allocation2 + $0x78] sm:$0xff]
        %v370 = vld [vmem:[#allocation2 + $0x80] sm:$0xff]
        %v371 = vld [vmem:[#allocation2 + $0x88] sm:$0xff]
        %v372 = vld [vmem:[#allocation2 + $0x90] sm:$0xff]
        %v373 = vld [vmem:[#allocation2 + $0x98] sm:$0xff]
        %v374 = vld [vmem:[#allocation2 + $0xa0] sm:$0xff]
        %v375 = vld [vmem:[#allocation2 + $0xa8] sm:$0xff]
        %v376 = vld [vmem:[#allocation2 + $0xb0] sm:$0xff]
        %v377 = vld [vmem:[#allocation2 + $0xb8] sm:$0xff]
        %v378 = vld [vmem:[#allocation2 + $0xc0] sm:$0xff]
        %v379 = vld [vmem:[#allocation2 + $0xc8] sm:$0xff]
        %v380 = vld [vmem:[#allocation2 + $0xd0] sm:$0xff]
        %v381 = vld [vmem:[#allocation2 + $0xd8] sm:$0xff]
        %v382 = vld [vmem:[#allocation2 + $0xe0] sm:$0xff]
        %v383 = vld [vmem:[#allocation2 + $0xe8] sm:$0xff]
        %v384 = vld [vmem:[#allocation2 + $0xf0] sm:$0xff]
        %v385 = vld [vmem:[#allocation2 + $0xf8] sm:$0xff]
        %v386 = vld [vmem:[%s1] sm:$0xf]
        %v387 = vld [vmem:[%s1 + $0x4] sm:$0xf]
        %v388 = vld [vmem:[%s1 + $0x8] sm:$0xf]
        %v389 = vld [vmem:[%s1 + $0xc] sm:$0xf]
        %v390 = vld [vmem:[%s1 + $0x10] sm:$0xf]
        %v391 = vld [vmem:[%s1 + $0x14] sm:$0xf]
        %v392 = vld [vmem:[%s1 + $0x18] sm:$0xf]
        %v393 = vld [vmem:[%s1 + $0x1c] sm:$0xf]
        %v394 = vld [vmem:[%s1 + $0x20] sm:$0xf]
        %v395 = vld [vmem:[%s1 + $0x24] sm:$0xf]
        %v396 = vld [vmem:[%s1 + $0x28] sm:$0xf]
        %v397 = vld [vmem:[%s1 + $0x2c] sm:$0xf]
        %v410 = vunpack.c.l.b16 %v386
        %v411 = vunpack.c.l.b16 %v387
        %v412 = vunpack.c.l.b16 %v388
        %v413 = vunpack.c.l.b16 %v389
        %v414 = vunpack.c.l.b16 %v390
        %v415 = vunpack.c.l.b16 %v391
        %v416 = vunpack.c.l.b16 %v392
        %v417 = vunpack.c.l.b16 %v393
        %v418 = vunpack.c.l.b16 %v394
        %v419 = vunpack.c.l.b16 %v395
        %v420 = vunpack.c.l.b16 %v396
        %v421 = vunpack.c.l.b16 %v397
        %v422 = vpack.c.b16 %v411, %v410
        %v423 = vpack.c.b16 %v413, %v412
        %v424 = vpack.c.b16 %v415, %v414
        %v425 = vpack.c.b16 %v417, %v416
        %v426 = vpack.c.b16 %v419, %v418
        %v427 = vpack.c.b16 %v421, %v420
        %vm434 = vcmask 785408
        %v436 = vsel %vm434, %v338, 0
        %v439 = vsel %vm434, %v339, 0
        %v442 = vsel %vm434, %v340, 0
        %v445 = vsel %vm434, %v341, 0
        %v448 = vsel %vm434, %v342, 0
        %v451 = vsel %vm434, %v343, 0
        %v454 = vsel %vm434, %v344, 0
        %v457 = vsel %vm434, %v345, 0
        %v460 = vsel %vm434, %v346, 0
        %v463 = vsel %vm434, %v347, 0
        %v466 = vsel %vm434, %v348, 0
        %v469 = vsel %vm434, %v349, 0
        %v472 = vsel %vm434, %v350, 0
        %v475 = vsel %vm434, %v351, 0
        %v478 = vsel %vm434, %v352, 0
        %v481 = vsel %vm434, %v353, 0
        %483 = vmatprep.subr.bf16.mxu0 0
        %484 = vmatpush1.bf16.msra.mxu0 %v422
        %485 = vmatprep.subr.bf16.mxu0 0
        %486 = vmatpush1.bf16.msra.mxu0 %v423
        %487 = vmatprep.subr.bf16.mxu0 0
        %488 = vmatpush1.bf16.msra.mxu0 %v424
        %489 = vmatprep.subr.bf16.mxu0 0
        %490 = vmatpush1.bf16.msra.mxu0 %v425
        %491 = vmatprep.subr.bf16.mxu0 0
        %492 = vmatpush1.bf16.msra.mxu0 %v426
        %493 = vmatprep.subr.bf16.mxu0 0
        %494 = vmatpush1.bf16.msra.mxu0 %v427
        %495 = vmatprep.subr.bf16.mxu0 0
        %496 = vmatpush1.bf16.msra.mxu0 0
        %497 = vmatprep.subr.bf16.mxu0 0
        %498 = vmatpush1.bf16.msra.mxu0 0
        %499 = vmatprep.subr.bf16.mxu0 0
        %500 = vmatpush1.bf16.msra.mxu0 0
        %501 = vmatprep.subr.bf16.mxu0 0
        %502 = vmatpush1.bf16.msra.mxu0 0
        %503 = vmatprep.subr.bf16.mxu0 0
        %504 = vmatpush1.bf16.msra.mxu0 0
        %505 = vmatprep.subr.bf16.mxu0 0
        %506 = vmatpush1.bf16.msra.mxu0 0
        %507 = vmatprep.subr.bf16.mxu0 0
        %508 = vmatpush1.bf16.msra.mxu0 0
        %509 = vmatprep.subr.bf16.mxu0 0
        %510 = vmatpush1.bf16.msra.mxu0 0
        %511 = vmatprep.subr.bf16.mxu0 0
        %512 = vmatpush1.bf16.msra.mxu0 0
        %513 = vmatprep.subr.bf16.mxu0 0
        %514 = vmatpush1.bf16.msra.mxu0 0
        %515 = vmatprep.mubr.bf16.mxu0 0
        %516 = vmatmul.mubr.bf16.gmra.mrb[0].mxu0 %v436
        %v517 = vpop.f32.mrb[0].mxu0
        %v518 = vadd.f32 0.0, %v517
        %v519 = vpop.f32.mrb[0].mxu0
        %v520 = vpop.f32.mrb[0].mxu0
        %v521 = vadd.f32 0.0, %v520
        %v522 = vpop.f32.mrb[0].mxu0
        %523 = vmatprep.mubr.bf16.mxu0 0
        %524 = vmatmul.mubr.bf16.gmra.mrb[0].mxu0 %v439
        %v525 = vpop.f32.mrb[0].mxu0
        %v526 = vadd.f32 0.0, %v525
        %v527 = vpop.f32.mrb[0].mxu0
        %v528 = vpop.f32.mrb[0].mxu0
        %v529 = vadd.f32 0.0, %v528
        %v530 = vpop.f32.mrb[0].mxu0
        %531 = vmatprep.mubr.bf16.mxu0 0
        %532 = vmatmul.mubr.bf16.gmra.mrb[0].mxu0 %v442
        %v533 = vpop.f32.mrb[0].mxu0
        %v534 = vadd.f32 0.0, %v533
        %v535 = vpop.f32.mrb[0].mxu0
        %v536 = vpop.f32.mrb[0].mxu0
        %v537 = vadd.f32 0.0, %v536
        %v538 = vpop.f32.mrb[0].mxu0
        %539 = vmatprep.mubr.bf16.mxu0 0
        %540 = vmatmul.mubr.bf16.gmra.mrb[0].mxu0 %v445
        %v541 = vpop.f32.mrb[0].mxu0
        %v542 = vadd.f32 0.0, %v541
        %v543 = vpop.f32.mrb[0].mxu0
        %v544 = vpop.f32.mrb[0].mxu0
        %v545 = vadd.f32 0.0, %v544
        %v546 = vpop.f32.mrb[0].mxu0
        %547 = vmatprep.mubr.bf16.mxu0 0
        %548 = vmatmul.mubr.bf16.gmra.mrb[0].mxu0 %v448
        %v549 = vpop.f32.mrb[0].mxu0
        %v550 = vadd.f32 0.0, %v549
        %v551 = vpop.f32.mrb[0].mxu0
        %v552 = vpop.f32.mrb[0].mxu0
        %v553 = vadd.f32 0.0, %v552
        %v554 = vpop.f32.mrb[0].mxu0
        %555 = vmatprep.mubr.bf16.mxu0 0
        %556 = vmatmul.mubr.bf16.gmra.mrb[0].mxu0 %v451
        %v557 = vpop.f32.mrb[0].mxu0
        %v558 = vadd.f32 0.0, %v557
        %v559 = vpop.f32.mrb[0].mxu0
        %v560 = vpop.f32.mrb[0].mxu0
        %v561 = vadd.f32 0.0, %v560
        %v562 = vpop.f32.mrb[0].mxu0
        %563 = vmatprep.mubr.bf16.mxu0 0
        %564 = vmatmul.mubr.bf16.gmra.mrb[0].mxu0 %v454
        %v565 = vpop.f32.mrb[0].mxu0
        %v566 = vadd.f32 0.0, %v565
        %v567 = vpop.f32.mrb[0].mxu0
        %v568 = vpop.f32.mrb[0].mxu0
        %v569 = vadd.f32 0.0, %v568
        %v570 = vpop.f32.mrb[0].mxu0
        %571 = vmatprep.mubr.bf16.mxu0 0
        %572 = vmatmul.mubr.bf16.gmra.mrb[0].mxu0 %v457
        %v573 = vpop.f32.mrb[0].mxu0
        %v574 = vadd.f32 0.0, %v573
        %v575 = vpop.f32.mrb[0].mxu0
        %v576 = vpop.f32.mrb[0].mxu0
        %v577 = vadd.f32 0.0, %v576
        %v578 = vpop.f32.mrb[0].mxu0
        %579 = vmatprep.mubr.bf16.mxu0 0
        %580 = vmatmul.mubr.bf16.gmra.mrb[0].mxu0 %v460
        %v581 = vpop.f32.mrb[0].mxu0
        %v582 = vadd.f32 0.0, %v581
        %v583 = vpop.f32.mrb[0].mxu0
        %v584 = vpop.f32.mrb[0].mxu0
        %v585 = vadd.f32 0.0, %v584
        %v586 = vpop.f32.mrb[0].mxu0
        %587 = vmatprep.mubr.bf16.mxu0 0
        %588 = vmatmul.mubr.bf16.gmra.mrb[0].mxu0 %v463
        %v589 = vpop.f32.mrb[0].mxu0
        %v590 = vadd.f32 0.0, %v589
        %v591 = vpop.f32.mrb[0].mxu0
        %v592 = vpop.f32.mrb[0].mxu0
        %v593 = vadd.f32 0.0, %v592
        %v594 = vpop.f32.mrb[0].mxu0
        %595 = vmatprep.mubr.bf16.mxu0 0
        %596 = vmatmul.mubr.bf16.gmra.mrb[0].mxu0 %v466
        %v597 = vpop.f32.mrb[0].mxu0
        %v598 = vadd.f32 0.0, %v597
        %v599 = vpop.f32.mrb[0].mxu0
        %v600 = vpop.f32.mrb[0].mxu0
        %v601 = vadd.f32 0.0, %v600
        %v602 = vpop.f32.mrb[0].mxu0
        %603 = vmatprep.mubr.bf16.mxu0 0
        %604 = vmatmul.mubr.bf16.gmra.mrb[0].mxu0 %v469
        %v605 = vpop.f32.mrb[0].mxu0
        %v606 = vadd.f32 0.0, %v605
        %v607 = vpop.f32.mrb[0].mxu0
        %v608 = vpop.f32.mrb[0].mxu0
        %v609 = vadd.f32 0.0, %v608
        %v610 = vpop.f32.mrb[0].mxu0
        %611 = vmatprep.mubr.bf16.mxu0 0
        %612 = vmatmul.mubr.bf16.gmra.mrb[0].mxu0 %v472
        %v613 = vpop.f32.mrb[0].mxu0
        %v614 = vadd.f32 0.0, %v613
        %v615 = vpop.f32.mrb[0].mxu0
        %v616 = vpop.f32.mrb[0].mxu0
        %v617 = vadd.f32 0.0, %v616
        %v618 = vpop.f32.mrb[0].mxu0
        %619 = vmatprep.mubr.bf16.mxu0 0
        %620 = vmatmul.mubr.bf16.gmra.mrb[0].mxu0 %v475
        %v621 = vpop.f32.mrb[0].mxu0
        %v622 = vadd.f32 0.0, %v621
        %v623 = vpop.f32.mrb[0].mxu0
        %v624 = vpop.f32.mrb[0].mxu0
        %v625 = vadd.f32 0.0, %v624
        %v626 = vpop.f32.mrb[0].mxu0
        %627 = vmatprep.mubr.bf16.mxu0 0
        %628 = vmatmul.mubr.bf16.gmra.mrb[0].mxu0 %v478
        %v629 = vpop.f32.mrb[0].mxu0
        %v630 = vadd.f32 0.0, %v629
        %v631 = vpop.f32.mrb[0].mxu0
        %v632 = vpop.f32.mrb[0].mxu0
        %v633 = vadd.f32 0.0, %v632
        %v634 = vpop.f32.mrb[0].mxu0
        %635 = vmatprep.mubr.bf16.mxu0 0
        %636 = vmatmul.mubr.bf16.gmra.mrb[0].mxu0 %v481
        %v637 = vpop.f32.mrb[0].mxu0
        %v638 = vadd.f32 0.0, %v637
        %v639 = vpop.f32.mrb[0].mxu0
        %v640 = vpop.f32.mrb[0].mxu0
        %v641 = vadd.f32 0.0, %v640
        %v642 = vpop.f32.mrb[0].mxu0
        %643 = vdwg.mxu0
        %v644 = vadd.f32 %v354, %v518
        %v645 = vadd.f32 %v355, %v521
        %v646 = vadd.f32 %v356, %v526
        %v647 = vadd.f32 %v357, %v529
        %v648 = vadd.f32 %v358, %v534
        %v649 = vadd.f32 %v359, %v537
        %v650 = vadd.f32 %v360, %v542
        %v651 = vadd.f32 %v361, %v545
        %v652 = vadd.f32 %v362, %v550
        %v653 = vadd.f32 %v363, %v553
        %v654 = vadd.f32 %v364, %v558
        %v655 = vadd.f32 %v365, %v561
        %v656 = vadd.f32 %v366, %v566
        %v657 = vadd.f32 %v367, %v569
        %v658 = vadd.f32 %v368, %v574
        %v659 = vadd.f32 %v369, %v577
        %v660 = vadd.f32 %v370, %v582
        %v661 = vadd.f32 %v371, %v585
        %v662 = vadd.f32 %v372, %v590
        %v663 = vadd.f32 %v373, %v593
        %v664 = vadd.f32 %v374, %v598
        %v665 = vadd.f32 %v375, %v601
        %v666 = vadd.f32 %v376, %v606
        %v667 = vadd.f32 %v377, %v609
        %v668 = vadd.f32 %v378, %v614
        %v669 = vadd.f32 %v379, %v617
        %v670 = vadd.f32 %v380, %v622
        %v671 = vadd.f32 %v381, %v625
        %v672 = vadd.f32 %v382, %v630
        %v673 = vadd.f32 %v383, %v633
        %v674 = vadd.f32 %v384, %v638
        %v675 = vadd.f32 %v385, %v641
        %676 = vst [vmem:[#allocation2] sm:$0xff] %v644
        %677 = vst [vmem:[#allocation2 + $0x8] sm:$0xff] %v645
        %678 = vst [vmem:[#allocation2 + $0x10] sm:$0xff] %v646
        %679 = vst [vmem:[#allocation2 + $0x18] sm:$0xff] %v647
        %680 = vst [vmem:[#allocation2 + $0x20] sm:$0xff] %v648
        %681 = vst [vmem:[#allocation2 + $0x28] sm:$0xff] %v649
        %682 = vst [vmem:[#allocation2 + $0x30] sm:$0xff] %v650
        %683 = vst [vmem:[#allocation2 + $0x38] sm:$0xff] %v651
        %684 = vst [vmem:[#allocation2 + $0x40] sm:$0xff] %v652
        %685 = vst [vmem:[#allocation2 + $0x48] sm:$0xff] %v653
        %686 = vst [vmem:[#allocation2 + $0x50] sm:$0xff] %v654
        %687 = vst [vmem:[#allocation2 + $0x58] sm:$0xff] %v655
        %688 = vst [vmem:[#allocation2 + $0x60] sm:$0xff] %v656
        %689 = vst [vmem:[#allocation2 + $0x68] sm:$0xff] %v657
        %690 = vst [vmem:[#allocation2 + $0x70] sm:$0xff] %v658
        %691 = vst [vmem:[#allocation2 + $0x78] sm:$0xff] %v659
        %692 = vst [vmem:[#allocation2 + $0x80] sm:$0xff] %v660
        %693 = vst [vmem:[#allocation2 + $0x88] sm:$0xff] %v661
        %694 = vst [vmem:[#allocation2 + $0x90] sm:$0xff] %v662
        %695 = vst [vmem:[#allocation2 + $0x98] sm:$0xff] %v663
        %696 = vst [vmem:[#allocation2 + $0xa0] sm:$0xff] %v664
        %697 = vst [vmem:[#allocation2 + $0xa8] sm:$0xff] %v665
        %698 = vst [vmem:[#allocation2 + $0xb0] sm:$0xff] %v666
        %699 = vst [vmem:[#allocation2 + $0xb8] sm:$0xff] %v667
        %700 = vst [vmem:[#allocation2 + $0xc0] sm:$0xff] %v668
        %701 = vst [vmem:[#allocation2 + $0xc8] sm:$0xff] %v669
        %702 = vst [vmem:[#allocation2 + $0xd0] sm:$0xff] %v670
        %703 = vst [vmem:[#allocation2 + $0xd8] sm:$0xff] %v671
        %704 = vst [vmem:[#allocation2 + $0xe0] sm:$0xff] %v672
        %705 = vst [vmem:[#allocation2 + $0xe8] sm:$0xff] %v673
        %706 = vst [vmem:[#allocation2 + $0xf0] sm:$0xff] %v674
        %707 = vst [vmem:[#allocation2 + $0xf8] sm:$0xff] %v675
        // Predicated region
        $region45: #{_pta_forward_impl.1} parent=39 // pred_check
          %p708 = pneg %p270
        $region46: #{_pta_forward_impl.1} parent=39 // pred_check_branch
          %710 = sbr.rel (%p708) target = $region48
        $region47: #{_pta_forward_impl.1} parent=39 // pred_region
          %v711 = vld [vmem:[#allocation2] sm:$0xff]
          %v712 = vld [vmem:[#allocation2 + $0x8] sm:$0xff]
          %v713 = vld [vmem:[#allocation2 + $0x10] sm:$0xff]
          %v714 = vld [vmem:[#allocation2 + $0x18] sm:$0xff]
          %v715 = vld [vmem:[#allocation2 + $0x20] sm:$0xff]
          %v716 = vld [vmem:[#allocation2 + $0x28] sm:$0xff]
          %v717 = vld [vmem:[#allocation2 + $0x30] sm:$0xff]
          %v718 = vld [vmem:[#allocation2 + $0x38] sm:$0xff]
          %v719 = vld [vmem:[#allocation2 + $0x40] sm:$0xff]
          %v720 = vld [vmem:[#allocation2 + $0x48] sm:$0xff]
          %v721 = vld [vmem:[#allocation2 + $0x50] sm:$0xff]
          %v722 = vld [vmem:[#allocation2 + $0x58] sm:$0xff]
          %v723 = vld [vmem:[#allocation2 + $0x60] sm:$0xff]
          %v724 = vld [vmem:[#allocation2 + $0x68] sm:$0xff]
          %v725 = vld [vmem:[#allocation2 + $0x70] sm:$0xff]
          %v726 = vld [vmem:[#allocation2 + $0x78] sm:$0xff]
          %v727 = vld [vmem:[#allocation2 + $0x80] sm:$0xff]
          %v728 = vld [vmem:[#allocation2 + $0x88] sm:$0xff]
          %v729 = vld [vmem:[#allocation2 + $0x90] sm:$0xff]
          %v730 = vld [vmem:[#allocation2 + $0x98] sm:$0xff]
          %v731 = vld [vmem:[#allocation2 + $0xa0] sm:$0xff]
          %v732 = vld [vmem:[#allocation2 + $0xa8] sm:$0xff]
          %v733 = vld [vmem:[#allocation2 + $0xb0] sm:$0xff]
          %v734 = vld [vmem:[#allocation2 + $0xb8] sm:$0xff]
          %v735 = vld [vmem:[#allocation2 + $0xc0] sm:$0xff]
          %v736 = vld [vmem:[#allocation2 + $0xc8] sm:$0xff]
          %v737 = vld [vmem:[#allocation2 + $0xd0] sm:$0xff]
          %v738 = vld [vmem:[#allocation2 + $0xd8] sm:$0xff]
          %v739 = vld [vmem:[#allocation2 + $0xe0] sm:$0xff]
          %v740 = vld [vmem:[#allocation2 + $0xe8] sm:$0xff]
          %v741 = vld [vmem:[#allocation2 + $0xf0] sm:$0xff]
          %v742 = vld [vmem:[#allocation2 + $0xf8] sm:$0xff]
          %v743 = vld [vmem:[%s2] sm:$0x1]
          %v745 = vlaneseq
          %v746 = vshrl.u32 %v745, 7
          %v747 = vsub.s32 0, %v746
          %v748 = vrot.slane %v743, %v747
          %v750 = vadd.f32 %v711, %v748
          %v751 = vadd.f32 %v712, %v748
          %v752 = vadd.f32 %v713, %v748
          %v753 = vadd.f32 %v714, %v748
          %v754 = vadd.f32 %v715, %v748
          %v755 = vadd.f32 %v716, %v748
          %v756 = vadd.f32 %v717, %v748
          %v757 = vadd.f32 %v718, %v748
          %v758 = vadd.f32 %v719, %v748
          %v759 = vadd.f32 %v720, %v748
          %v760 = vadd.f32 %v721, %v748
          %v761 = vadd.f32 %v722, %v748
          %v762 = vadd.f32 %v723, %v748
          %v763 = vadd.f32 %v724, %v748
          %v764 = vadd.f32 %v725, %v748
          %v765 = vadd.f32 %v726, %v748
          %v766 = vadd.f32 %v727, %v748
          %v767 = vadd.f32 %v728, %v748
          %v768 = vadd.f32 %v729, %v748
          %v769 = vadd.f32 %v730, %v748
          %v770 = vadd.f32 %v731, %v748
          %v771 = vadd.f32 %v732, %v748
          %v772 = vadd.f32 %v733, %v748
          %v773 = vadd.f32 %v734, %v748
          %v774 = vadd.f32 %v735, %v748
          %v775 = vadd.f32 %v736, %v748
          %v776 = vadd.f32 %v737, %v748
          %v777 = vadd.f32 %v738, %v748
          %v778 = vadd.f32 %v739, %v748
          %v779 = vadd.f32 %v740, %v748
          %v780 = vadd.f32 %v741, %v748
          %v781 = vadd.f32 %v742, %v748
          %v782 = vmax.f32 %v750, 0.0
          %v783 = vmax.f32 %v751, 0.0
          %v784 = vmax.f32 %v752, 0.0
          %v785 = vmax.f32 %v753, 0.0
          %v786 = vmax.f32 %v754, 0.0
          %v787 = vmax.f32 %v755, 0.0
          %v788 = vmax.f32 %v756, 0.0
          %v789 = vmax.f32 %v757, 0.0
          %v790 = vmax.f32 %v758, 0.0
          %v791 = vmax.f32 %v759, 0.0
          %v792 = vmax.f32 %v760, 0.0
          %v793 = vmax.f32 %v761, 0.0
          %v794 = vmax.f32 %v762, 0.0
          %v795 = vmax.f32 %v763, 0.0
          %v796 = vmax.f32 %v764, 0.0
          %v797 = vmax.f32 %v765, 0.0
          %v798 = vmax.f32 %v766, 0.0
          %v799 = vmax.f32 %v767, 0.0
          %v800 = vmax.f32 %v768, 0.0
          %v801 = vmax.f32 %v769, 0.0
          %v802 = vmax.f32 %v770, 0.0
          %v803 = vmax.f32 %v771, 0.0
          %v804 = vmax.f32 %v772, 0.0
          %v805 = vmax.f32 %v773, 0.0
          %v806 = vmax.f32 %v774, 0.0
          %v807 = vmax.f32 %v775, 0.0
          %v808 = vmax.f32 %v776, 0.0
          %v809 = vmax.f32 %v777, 0.0
          %v810 = vmax.f32 %v778, 0.0
          %v811 = vmax.f32 %v779, 0.0
          %v812 = vmax.f32 %v780, 0.0
          %v813 = vmax.f32 %v781, 0.0
          %v814 = vpack.c.bf16 %v783, %v782
          %v815 = vpack.c.bf16 %v785, %v784
          %v816 = vpack.c.bf16 %v787, %v786
          %v817 = vpack.c.bf16 %v789, %v788
          %v818 = vpack.c.bf16 %v791, %v790
          %v819 = vpack.c.bf16 %v793, %v792
          %v820 = vpack.c.bf16 %v795, %v794
          %v821 = vpack.c.bf16 %v797, %v796
          %v822 = vpack.c.bf16 %v799, %v798
          %v823 = vpack.c.bf16 %v801, %v800
          %v824 = vpack.c.bf16 %v803, %v802
          %v825 = vpack.c.bf16 %v805, %v804
          %v826 = vpack.c.bf16 %v807, %v806
          %v827 = vpack.c.bf16 %v809, %v808
          %v828 = vpack.c.bf16 %v811, %v810
          %v829 = vpack.c.bf16 %v813, %v812
          %v830 = vld [vmem:[%s3] sm:$0xf]
          %v831 = vld [vmem:[%s3 + $0x4] sm:$0xf]
          %v832 = vld [vmem:[%s3 + $0x8] sm:$0xf]
          %v833 = vld [vmem:[%s3 + $0xc] sm:$0xf]
          %v834 = vld [vmem:[%s3 + $0x10] sm:$0xf]
          %v835 = vld [vmem:[%s3 + $0x14] sm:$0xf]
          %v836 = vld [vmem:[%s3 + $0x18] sm:$0xf]
          %v837 = vld [vmem:[%s3 + $0x1c] sm:$0xf]
          %v838 = vld [vmem:[%s3 + $0x20] sm:$0xf]
          %v839 = vld [vmem:[%s3 + $0x24] sm:$0xf]
          %v840 = vld [vmem:[%s3 + $0x28] sm:$0xf]
          %v841 = vld [vmem:[%s3 + $0x2c] sm:$0xf]
          %v842 = vld [vmem:[%s3 + $0x30] sm:$0xf]
          %v843 = vld [vmem:[%s3 + $0x34] sm:$0xf]
          %v844 = vld [vmem:[%s3 + $0x38] sm:$0xf]
          %v845 = vld [vmem:[%s3 + $0x3c] sm:$0xf]
          %v846 = vld [vmem:[%s4] sm:$0x1]
          %v848 = vlaneseq
          %v849 = vshrl.u32 %v848, 7
          %v850 = vsub.s32 0, %v849
          %v851 = vrot.slane %v846, %v850
          %v869 = vunpack.c.l.b16 %v830
          %v870 = vunpack.c.l.b16 %v831
          %v871 = vunpack.c.l.b16 %v832
          %v872 = vunpack.c.l.b16 %v833
          %v873 = vunpack.c.l.b16 %v834
          %v874 = vunpack.c.l.b16 %v835
          %v875 = vunpack.c.l.b16 %v836
          %v876 = vunpack.c.l.b16 %v837
          %v877 = vunpack.c.l.b16 %v838
          %v878 = vunpack.c.l.b16 %v839
          %v879 = vunpack.c.l.b16 %v840
          %v880 = vunpack.c.l.b16 %v841
          %v881 = vunpack.c.l.b16 %v842
          %v882 = vunpack.c.l.b16 %v843
          %v883 = vunpack.c.l.b16 %v844
          %v884 = vunpack.c.l.b16 %v845
          %v885 = vpack.c.b16 %v870, %v869
          %v886 = vpack.c.b16 %v872, %v871
          %v887 = vpack.c.b16 %v874, %v873
          %v888 = vpack.c.b16 %v876, %v875
          %v889 = vpack.c.b16 %v878, %v877
          %v890 = vpack.c.b16 %v880, %v879
          %v891 = vpack.c.b16 %v882, %v881
          %v892 = vpack.c.b16 %v884, %v883
          %901 = vmatprep.subr.bf16.mxu0 0
          %902 = vmatpush1.bf16.msra.mxu0 %v885
          %903 = vmatprep.subr.bf16.mxu0 0
          %904 = vmatpush1.bf16.msra.mxu0 %v886
          %905 = vmatprep.subr.bf16.mxu0 0
          %906 = vmatpush1.bf16.msra.mxu0 %v887
          %907 = vmatprep.subr.bf16.mxu0 0
          %908 = vmatpush1.bf16.msra.mxu0 %v888
          %909 = vmatprep.subr.bf16.mxu0 0
          %910 = vmatpush1.bf16.msra.mxu0 %v889
          %911 = vmatprep.subr.bf16.mxu0 0
          %912 = vmatpush1.bf16.msra.mxu0 %v890
          %913 = vmatprep.subr.bf16.mxu0 0
          %914 = vmatpush1.bf16.msra.mxu0 %v891
          %915 = vmatprep.subr.bf16.mxu0 0
          %916 = vmatpush1.bf16.msra.mxu0 %v892
          %917 = vmatprep.subr.bf16.mxu0 0
          %918 = vmatpush1.bf16.msra.mxu0 0
          %919 = vmatprep.subr.bf16.mxu0 0
          %920 = vmatpush1.bf16.msra.mxu0 0
          %921 = vmatprep.subr.bf16.mxu0 0
          %922 = vmatpush1.bf16.msra.mxu0 0
          %923 = vmatprep.subr.bf16.mxu0 0
          %924 = vmatpush1.bf16.msra.mxu0 0
          %925 = vmatprep.subr.bf16.mxu0 0
          %926 = vmatpush1.bf16.msra.mxu0 0
          %927 = vmatprep.subr.bf16.mxu0 0
          %928 = vmatpush1.bf16.msra.mxu0 0
          %929 = vmatprep.subr.bf16.mxu0 0
          %930 = vmatpush1.bf16.msra.mxu0 0
          %931 = vmatprep.subr.bf16.mxu0 0
          %932 = vmatpush1.bf16.msra.mxu0 0
          %933 = vmatprep.mubr.bf16.mxu0 0
          %934 = vmatmul.mubr.bf16.gmra.mrb[0].mxu0 %v814
          %v935 = vpop.f32.mrb[0].mxu0
          %v936 = vadd.f32 %v851, %v935
          %v937 = vpop.f32.mrb[0].mxu0
          %v938 = vpop.f32.mrb[0].mxu0
          %v939 = vadd.f32 %v851, %v938
          %v940 = vpop.f32.mrb[0].mxu0
          %941 = vmatprep.mubr.bf16.mxu0 0
          %942 = vmatmul.mubr.bf16.gmra.mrb[0].mxu0 %v815
          %v943 = vpop.f32.mrb[0].mxu0
          %v944 = vadd.f32 %v851, %v943
          %v945 = vpop.f32.mrb[0].mxu0
          %v946 = vpop.f32.mrb[0].mxu0
          %v947 = vadd.f32 %v851, %v946
          %v948 = vpop.f32.mrb[0].mxu0
          %949 = vmatprep.mubr.bf16.mxu0 0
          %950 = vmatmul.mubr.bf16.gmra.mrb[0].mxu0 %v816
          %v951 = vpop.f32.mrb[0].mxu0
          %v952 = vadd.f32 %v851, %v951
          %v953 = vpop.f32.mrb[0].mxu0
          %v954 = vpop.f32.mrb[0].mxu0
          %v955 = vadd.f32 %v851, %v954
          %v956 = vpop.f32.mrb[0].mxu0
          %957 = vmatprep.mubr.bf16.mxu0 0
          %958 = vmatmul.mubr.bf16.gmra.mrb[0].mxu0 %v817
          %v959 = vpop.f32.mrb[0].mxu0
          %v960 = vadd.f32 %v851, %v959
          %v961 = vpop.f32.mrb[0].mxu0
          %v962 = vpop.f32.mrb[0].mxu0
          %v963 = vadd.f32 %v851, %v962
          %v964 = vpop.f32.mrb[0].mxu0
          %965 = vmatprep.mubr.bf16.mxu0 0
          %966 = vmatmul.mubr.bf16.gmra.mrb[0].mxu0 %v818
          %v967 = vpop.f32.mrb[0].mxu0
          %v968 = vadd.f32 %v851, %v967
          %v969 = vpop.f32.mrb[0].mxu0
          %v970 = vpop.f32.mrb[0].mxu0
          %v971 = vadd.f32 %v851, %v970
          %v972 = vpop.f32.mrb[0].mxu0
          %973 = vmatprep.mubr.bf16.mxu0 0
          %974 = vmatmul.mubr.bf16.gmra.mrb[0].mxu0 %v819
          %v975 = vpop.f32.mrb[0].mxu0
          %v976 = vadd.f32 %v851, %v975
          %v977 = vpop.f32.mrb[0].mxu0
          %v978 = vpop.f32.mrb[0].mxu0
          %v979 = vadd.f32 %v851, %v978
          %v980 = vpop.f32.mrb[0].mxu0
          %981 = vmatprep.mubr.bf16.mxu0 0
          %982 = vmatmul.mubr.bf16.gmra.mrb[0].mxu0 %v820
          %v983 = vpop.f32.mrb[0].mxu0
          %v984 = vadd.f32 %v851, %v983
          %v985 = vpop.f32.mrb[0].mxu0
          %v986 = vpop.f32.mrb[0].mxu0
          %v987 = vadd.f32 %v851, %v986
          %v988 = vpop.f32.mrb[0].mxu0
          %989 = vmatprep.mubr.bf16.mxu0 0
          %990 = vmatmul.mubr.bf16.gmra.mrb[0].mxu0 %v821
          %v991 = vpop.f32.mrb[0].mxu0
          %v992 = vadd.f32 %v851, %v991
          %v993 = vpop.f32.mrb[0].mxu0
          %v994 = vpop.f32.mrb[0].mxu0
          %v995 = vadd.f32 %v851, %v994
          %v996 = vpop.f32.mrb[0].mxu0
          %997 = vmatprep.mubr.bf16.mxu0 0
          %998 = vmatmul.mubr.bf16.gmra.mrb[0].mxu0 %v822
          %v999 = vpop.f32.mrb[0].mxu0
          %v1000 = vadd.f32 %v851, %v999
          %v1001 = vpop.f32.mrb[0].mxu0
          %v1002 = vpop.f32.mrb[0].mxu0
          %v1003 = vadd.f32 %v851, %v1002
          %v1004 = vpop.f32.mrb[0].mxu0
          %1005 = vmatprep.mubr.bf16.mxu0 0
          %1006 = vmatmul.mubr.bf16.gmra.mrb[0].mxu0 %v823
          %v1007 = vpop.f32.mrb[0].mxu0
          %v1008 = vadd.f32 %v851, %v1007
          %v1009 = vpop.f32.mrb[0].mxu0
          %v1010 = vpop.f32.mrb[0].mxu0
          %v1011 = vadd.f32 %v851, %v1010
          %v1012 = vpop.f32.mrb[0].mxu0
          %1013 = vmatprep.mubr.bf16.mxu0 0
          %1014 = vmatmul.mubr.bf16.gmra.mrb[0].mxu0 %v824
          %v1015 = vpop.f32.mrb[0].mxu0
          %v1016 = vadd.f32 %v851, %v1015
          %v1017 = vpop.f32.mrb[0].mxu0
          %v1018 = vpop.f32.mrb[0].mxu0
          %v1019 = vadd.f32 %v851, %v1018
          %v1020 = vpop.f32.mrb[0].mxu0
          %1021 = vmatprep.mubr.bf16.mxu0 0
          %1022 = vmatmul.mubr.bf16.gmra.mrb[0].mxu0 %v825
          %v1023 = vpop.f32.mrb[0].mxu0
          %v1024 = vadd.f32 %v851, %v1023
          %v1025 = vpop.f32.mrb[0].mxu0
          %v1026 = vpop.f32.mrb[0].mxu0
          %v1027 = vadd.f32 %v851, %v1026
          %v1028 = vpop.f32.mrb[0].mxu0
          %1029 = vmatprep.mubr.bf16.mxu0 0
          %1030 = vmatmul.mubr.bf16.gmra.mrb[0].mxu0 %v826
          %v1031 = vpop.f32.mrb[0].mxu0
          %v1032 = vadd.f32 %v851, %v1031
          %v1033 = vpop.f32.mrb[0].mxu0
          %v1034 = vpop.f32.mrb[0].mxu0
          %v1035 = vadd.f32 %v851, %v1034
          %v1036 = vpop.f32.mrb[0].mxu0
          %1037 = vmatprep.mubr.bf16.mxu0 0
          %1038 = vmatmul.mubr.bf16.gmra.mrb[0].mxu0 %v827
          %v1039 = vpop.f32.mrb[0].mxu0
          %v1040 = vadd.f32 %v851, %v1039
          %v1041 = vpop.f32.mrb[0].mxu0
          %v1042 = vpop.f32.mrb[0].mxu0
          %v1043 = vadd.f32 %v851, %v1042
          %v1044 = vpop.f32.mrb[0].mxu0
          %1045 = vmatprep.mubr.bf16.mxu0 0
          %1046 = vmatmul.mubr.bf16.gmra.mrb[0].mxu0 %v828
          %v1047 = vpop.f32.mrb[0].mxu0
          %v1048 = vadd.f32 %v851, %v1047
          %v1049 = vpop.f32.mrb[0].mxu0
          %v1050 = vpop.f32.mrb[0].mxu0
          %v1051 = vadd.f32 %v851, %v1050
          %v1052 = vpop.f32.mrb[0].mxu0
          %1053 = vmatprep.mubr.bf16.mxu0 0
          %1054 = vmatmul.mubr.bf16.gmra.mrb[0].mxu0 %v829
          %v1055 = vpop.f32.mrb[0].mxu0
          %v1056 = vadd.f32 %v851, %v1055
          %v1057 = vpop.f32.mrb[0].mxu0
          %v1058 = vpop.f32.mrb[0].mxu0
          %v1059 = vadd.f32 %v851, %v1058
          %v1060 = vpop.f32.mrb[0].mxu0
          %1061 = vdwg.mxu0
          %vm1062 = vcmask 80896
          %1063 = vst.msk [vmem:[%s246] sm:$0xff] %vm1062, %v936
          %1064 = vst.msk [vmem:[%s246 + $0x8] sm:$0xff] %vm1062, %v939
          %1065 = vst.msk [vmem:[%s246 + $0x10] sm:$0xff] %vm1062, %v944
          %1066 = vst.msk [vmem:[%s246 + $0x18] sm:$0xff] %vm1062, %v947
          %1067 = vst.msk [vmem:[%s246 + $0x20] sm:$0xff] %vm1062, %v952
          %1068 = vst.msk [vmem:[%s246 + $0x28] sm:$0xff] %vm1062, %v955
          %1069 = vst.msk [vmem:[%s246 + $0x30] sm:$0xff] %vm1062, %v960
          %1070 = vst.msk [vmem:[%s246 + $0x38] sm:$0xff] %vm1062, %v963
          %1071 = vst.msk [vmem:[%s246 + $0x40] sm:$0xff] %vm1062, %v968
          %1072 = vst.msk [vmem:[%s246 + $0x48] sm:$0xff] %vm1062, %v971
          %1073 = vst.msk [vmem:[%s246 + $0x50] sm:$0xff] %vm1062, %v976
          %1074 = vst.msk [vmem:[%s246 + $0x58] sm:$0xff] %vm1062, %v979
          %1075 = vst.msk [vmem:[%s246 + $0x60] sm:$0xff] %vm1062, %v984
          %1076 = vst.msk [vmem:[%s246 + $0x68] sm:$0xff] %vm1062, %v987
          %1077 = vst.msk [vmem:[%s246 + $0x70] sm:$0xff] %vm1062, %v992
          %1078 = vst.msk [vmem:[%s246 + $0x78] sm:$0xff] %vm1062, %v995
          %1079 = vst.msk [vmem:[%s246 + $0x80] sm:$0xff] %vm1062, %v1000
          %1080 = vst.msk [vmem:[%s246 + $0x88] sm:$0xff] %vm1062, %v1003
          %1081 = vst.msk [vmem:[%s246 + $0x90] sm:$0xff] %vm1062, %v1008
          %1082 = vst.msk [vmem:[%s246 + $0x98] sm:$0xff] %vm1062, %v1011
          %1083 = vst.msk [vmem:[%s246 + $0xa0] sm:$0xff] %vm1062, %v1016
          %1084 = vst.msk [vmem:[%s246 + $0xa8] sm:$0xff] %vm1062, %v1019
          %1085 = vst.msk [vmem:[%s246 + $0xb0] sm:$0xff] %vm1062, %v1024
          %1086 = vst.msk [vmem:[%s246 + $0xb8] sm:$0xff] %vm1062, %v1027
          %1087 = vst.msk [vmem:[%s246 + $0xc0] sm:$0xff] %vm1062, %v1032
          %1088 = vst.msk [vmem:[%s246 + $0xc8] sm:$0xff] %vm1062, %v1035
          %1089 = vst.msk [vmem:[%s246 + $0xd0] sm:$0xff] %vm1062, %v1040
          %1090 = vst.msk [vmem:[%s246 + $0xd8] sm:$0xff] %vm1062, %v1043
          %1091 = vst.msk [vmem:[%s246 + $0xe0] sm:$0xff] %vm1062, %v1048
          %1092 = vst.msk [vmem:[%s246 + $0xe8] sm:$0xff] %vm1062, %v1051
          %1093 = vst.msk [vmem:[%s246 + $0xf0] sm:$0xff] %vm1062, %v1056
          %1094 = vst.msk [vmem:[%s246 + $0xf8] sm:$0xff] %vm1062, %v1059
        $region48: #{_pta_forward_impl.1} parent=39 // pred_fallthru
          _
        %s1095 = sand.u32 %s148, 1
        %s1096 = sand.u32 %s148, 1
        %s1097 = smul.addr %s1096, 256
        %s1098 = scalar_lea.vmem [#allocation3], %s1097
        // Predicated region
        $region49: #{_pta_forward_impl.1} parent=39 // pred_check
          %p1099 = pneg %p158
        $region50: #{_pta_forward_impl.1} parent=39 // pred_check_branch
          %1101 = sbr.rel (%p1099) target = $region52
        $region51: #{_pta_forward_impl.1} parent=39 // pred_region
          %s1102 = smul.u32 32, %s20
          %s1103 = ssub.s32 130, %s1102
          %p1104 = scmp.lt.s32.totalorder %s1103, 32
          %s1105 = scalar_select %p1104, %s1103, 32
          %s1106 = smul.u32 128, %s1105
          %p1107 = scmp.ne.s32.totalorder 0, %s1106
          %s1108 = smul.addr %s1102, 8
          %s1109 = scalar_lea.vmem %s5, %s1108
          // Predicated region
          $region53: #{_pta_forward_impl.1} parent=51 // pred_check
            %p1110 = pneg %p1107
          $region54: #{_pta_forward_impl.1} parent=51 // pred_check_branch
            %1112 = sbr.rel (%p1110) target = $region56
          $region55: #{_pta_forward_impl.1} parent=51 // pred_region
            // Predicated region
            $region57: #{_pta_forward_impl.1} parent=55 // pred_check
              _
            $region58: #{_pta_forward_impl.1} parent=55 // pred_check_branch
              %1114 = sbr.rel (0) target = $region60
            $region59: #{_pta_forward_impl.1} parent=55 // pred_region
              // Predicated region
              $region79: #{_pta_forward_impl.1} parent=59 // pred_check
                _
              $region80: #{_pta_forward_impl.1} parent=59 // pred_check_branch
                %1225 = sbr.rel (0) target = $region82
              $region81: #{_pta_forward_impl.1} parent=59 // pred_region
                %s1226 = sshrl.u32 %s1105, 5
                // While loop
                $region83: #{_pta_forward_impl.1} parent=81 // loop_pre_header
                  _
                $region84: #{_pta_forward_impl.1} parent=81 // loop_header
                  %s1228 = sphi 0, %s1230
                  %p1229 = scmp.ge.s32.totalorder %s1228, %s1226
                  %s1233 = sphi 0, %s1302
                  %s1234 = sphi %s1098, %s1305
                  %s1235 = sphi %s1109, %s1306
                $region85: #{_pta_forward_impl.1} parent=81 // loop_header_branch
                  %1232 = sbr.rel (%p1229) target = $region89
                $region86: #{_pta_forward_impl.1} parent=81 // loop_body
                  %v1236 = vld [vmem:[%s1234] sm:$0xff]
                  %1237 = vst [vmem:[%s1235] sm:$0xff] %v1236
                  %v1238 = vld [vmem:[%s1234 + $0x8] sm:$0xff]
                  %1239 = vst [vmem:[%s1235 + $0x8] sm:$0xff] %v1238
                  %v1240 = vld [vmem:[%s1234 + $0x10] sm:$0xff]
                  %1241 = vst [vmem:[%s1235 + $0x10] sm:$0xff] %v1240
                  %v1242 = vld [vmem:[%s1234 + $0x18] sm:$0xff]
                  %1243 = vst [vmem:[%s1235 + $0x18] sm:$0xff] %v1242
                  %v1244 = vld [vmem:[%s1234 + $0x20] sm:$0xff]
                  %1245 = vst [vmem:[%s1235 + $0x20] sm:$0xff] %v1244
                  %v1246 = vld [vmem:[%s1234 + $0x28] sm:$0xff]
                  %1247 = vst [vmem:[%s1235 + $0x28] sm:$0xff] %v1246
                  %v1248 = vld [vmem:[%s1234 + $0x30] sm:$0xff]
                  %1249 = vst [vmem:[%s1235 + $0x30] sm:$0xff] %v1248
                  %v1250 = vld [vmem:[%s1234 + $0x38] sm:$0xff]
                  %1251 = vst [vmem:[%s1235 + $0x38] sm:$0xff] %v1250
                  %v1252 = vld [vmem:[%s1234 + $0x40] sm:$0xff]
                  %1253 = vst [vmem:[%s1235 + $0x40] sm:$0xff] %v1252
                  %v1254 = vld [vmem:[%s1234 + $0x48] sm:$0xff]
                  %1255 = vst [vmem:[%s1235 + $0x48] sm:$0xff] %v1254
                  %v1256 = vld [vmem:[%s1234 + $0x50] sm:$0xff]
                  %1257 = vst [vmem:[%s1235 + $0x50] sm:$0xff] %v1256
                  %v1258 = vld [vmem:[%s1234 + $0x58] sm:$0xff]
                  %1259 = vst [vmem:[%s1235 + $0x58] sm:$0xff] %v1258
                  %v1260 = vld [vmem:[%s1234 + $0x60] sm:$0xff]
                  %1261 = vst [vmem:[%s1235 + $0x60] sm:$0xff] %v1260
                  %v1262 = vld [vmem:[%s1234 + $0x68] sm:$0xff]
                  %1263 = vst [vmem:[%s1235 + $0x68] sm:$0xff] %v1262
                  %v1264 = vld [vmem:[%s1234 + $0x70] sm:$0xff]
                  %1265 = vst [vmem:[%s1235 + $0x70] sm:$0xff] %v1264
                  %v1266 = vld [vmem:[%s1234 + $0x78] sm:$0xff]
                  %1267 = vst [vmem:[%s1235 + $0x78] sm:$0xff] %v1266
                  %v1268 = vld [vmem:[%s1234 + $0x80] sm:$0xff]
                  %1269 = vst [vmem:[%s1235 + $0x80] sm:$0xff] %v1268
                  %v1270 = vld [vmem:[%s1234 + $0x88] sm:$0xff]
                  %1271 = vst [vmem:[%s1235 + $0x88] sm:$0xff] %v1270
                  %v1272 = vld [vmem:[%s1234 + $0x90] sm:$0xff]
                  %1273 = vst [vmem:[%s1235 + $0x90] sm:$0xff] %v1272
                  %v1274 = vld [vmem:[%s1234 + $0x98] sm:$0xff]
                  %1275 = vst [vmem:[%s1235 + $0x98] sm:$0xff] %v1274
                  %v1276 = vld [vmem:[%s1234 + $0xa0] sm:$0xff]
                  %1277 = vst [vmem:[%s1235 + $0xa0] sm:$0xff] %v1276
                  %v1278 = vld [vmem:[%s1234 + $0xa8] sm:$0xff]
                  %1279 = vst [vmem:[%s1235 + $0xa8] sm:$0xff] %v1278
                  %v1280 = vld [vmem:[%s1234 + $0xb0] sm:$0xff]
                  %1281 = vst [vmem:[%s1235 + $0xb0] sm:$0xff] %v1280
                  %v1282 = vld [vmem:[%s1234 + $0xb8] sm:$0xff]
                  %1283 = vst [vmem:[%s1235 + $0xb8] sm:$0xff] %v1282
                  %v1284 = vld [vmem:[%s1234 + $0xc0] sm:$0xff]
                  %1285 = vst [vmem:[%s1235 + $0xc0] sm:$0xff] %v1284
                  %v1286 = vld [vmem:[%s1234 + $0xc8] sm:$0xff]
                  %1287 = vst [vmem:[%s1235 + $0xc8] sm:$0xff] %v1286
                  %v1288 = vld [vmem:[%s1234 + $0xd0] sm:$0xff]
                  %1289 = vst [vmem:[%s1235 + $0xd0] sm:$0xff] %v1288
                  %v1290 = vld [vmem:[%s1234 + $0xd8] sm:$0xff]
                  %1291 = vst [vmem:[%s1235 + $0xd8] sm:$0xff] %v1290
                  %v1292 = vld [vmem:[%s1234 + $0xe0] sm:$0xff]
                  %1293 = vst [vmem:[%s1235 + $0xe0] sm:$0xff] %v1292
                  %v1294 = vld [vmem:[%s1234 + $0xe8] sm:$0xff]
                  %1295 = vst [vmem:[%s1235 + $0xe8] sm:$0xff] %v1294
                  %v1296 = vld [vmem:[%s1234 + $0xf0] sm:$0xff]
                  %1297 = vst [vmem:[%s1235 + $0xf0] sm:$0xff] %v1296
                  %v1298 = vld [vmem:[%s1234 + $0xf8] sm:$0xff]
                  %1299 = vst [vmem:[%s1235 + $0xf8] sm:$0xff] %v1298
                  %s1300 = sadd.s32 1, %s1233
                  %p1301 = scmp.ge.s32.totalorder %s1300, %s1226
                  %s1302 = scalar_select %p1301, 0, %s1300
                  %s1303 = smul.u32 %s1302, 256
                  %s1304 = smul.u32 %s1302, 256
                  %s1305 = scalar_lea.vmem %s1098, %s1303 [#allocation3]
                  %s1306 = scalar_lea.vmem %s1109, %s1304
                $region87: #{_pta_forward_impl.1} parent=81 // loop_footer
                  %s1230 = sadd.s32 %s1228, 1
                $region88: #{_pta_forward_impl.1} parent=81 // loop_footer_branch
                  %1227 = sbr.rel target = $region84
                $region89: #{_pta_forward_impl.1} parent=81 // loop_exit
                  _
                %s1307 = sshrl.u32 %s1105, 5
                %s1308 = sand.u32 %s1105, 31
                %s1309 = smul.u32 %s1307, 32
                %s1310 = smul.u32 8, %s1309
                %s1311 = scalar_lea.vmem %s1098, %s1310 [#allocation3]
                %s1312 = smul.u32 8, %s1309
                %s1313 = scalar_lea.vmem %s1109, %s1312
                // While loop
                $region90: #{_pta_forward_impl.1} parent=81 // loop_pre_header
                  _
                $region91: #{_pta_forward_impl.1} parent=81 // loop_header
                  %s1315 = sphi 0, %s1317
                  %p1316 = scmp.ge.s32.totalorder %s1315, %s1308
                  %s1320 = sphi 0, %s1327
                  %s1321 = sphi %s1311, %s1330
                  %s1322 = sphi %s1313, %s1331
                $region92: #{_pta_forward_impl.1} parent=81 // loop_header_branch
                  %1319 = sbr.rel (%p1316) target = $region96
                $region93: #{_pta_forward_impl.1} parent=81 // loop_body
                  %v1323 = vld [vmem:[%s1321] sm:$0xff]
                  %1324 = vst [vmem:[%s1322] sm:$0xff] %v1323
                  %s1325 = sadd.s32 1, %s1320
                  %p1326 = scmp.ge.s32.totalorder %s1325, %s1308
                  %s1327 = scalar_select %p1326, 0, %s1325
                  %s1328 = smul.u32 %s1327, 8
                  %s1329 = smul.u32 %s1327, 8
                  %s1330 = scalar_lea.vmem %s1311, %s1328 [#allocation3]
                  %s1331 = scalar_lea.vmem %s1313, %s1329
                $region94: #{_pta_forward_impl.1} parent=81 // loop_footer
                  %s1317 = sadd.s32 %s1315, 1
                $region95: #{_pta_forward_impl.1} parent=81 // loop_footer_branch
                  %1314 = sbr.rel target = $region91
                $region96: #{_pta_forward_impl.1} parent=81 // loop_exit
                  _
              $region82: #{_pta_forward_impl.1} parent=59 // pred_fallthru
                _
              // Predicated region
              $region97: #{_pta_forward_impl.1} parent=59 // pred_check
                _
              $region98: #{_pta_forward_impl.1} parent=59 // pred_check_branch
                %1333 = sbr.rel target = $region100
              $region99: #{_pta_forward_impl.1} parent=59 // pred_region
                _
              $region100: #{_pta_forward_impl.1} parent=59 // pred_fallthru
                _
            $region60: #{_pta_forward_impl.1} parent=55 // pred_fallthru
              _
            // Predicated region
            $region61: #{_pta_forward_impl.1} parent=55 // pred_check
              _
            $region62: #{_pta_forward_impl.1} parent=55 // pred_check_branch
              %1116 = sbr.rel target = $region64
            $region63: #{_pta_forward_impl.1} parent=55 // pred_region
              %s1118 = sshrl.u32 %s1105, 5
              // While loop
              $region65: #{_pta_forward_impl.1} parent=63 // loop_pre_header
                _
              $region66: #{_pta_forward_impl.1} parent=63 // loop_header
                %s1120 = sphi 0, %s1122
                %p1121 = scmp.ge.s32.totalorder %s1120, %s1118
                %s1125 = sphi 0, %s1194
                %s1126 = sphi %s1098, %s1197
                %s1127 = sphi %s1109, %s1198
              $region67: #{_pta_forward_impl.1} parent=63 // loop_header_branch
                %1124 = sbr.rel (%p1121) target = $region71
              $region68: #{_pta_forward_impl.1} parent=63 // loop_body
                %v1128 = vld [vmem:[%s1126] sm:$0xff]
                %1129 = vst [vmem:[%s1127] sm:$0xff] %v1128
                %v1130 = vld [vmem:[%s1126 + $0x8] sm:$0xff]
                %1131 = vst [vmem:[%s1127 + $0x8] sm:$0xff] %v1130
                %v1132 = vld [vmem:[%s1126 + $0x10] sm:$0xff]
                %1133 = vst [vmem:[%s1127 + $0x10] sm:$0xff] %v1132
                %v1134 = vld [vmem:[%s1126 + $0x18] sm:$0xff]
                %1135 = vst [vmem:[%s1127 + $0x18] sm:$0xff] %v1134
                %v1136 = vld [vmem:[%s1126 + $0x20] sm:$0xff]
                %1137 = vst [vmem:[%s1127 + $0x20] sm:$0xff] %v1136
                %v1138 = vld [vmem:[%s1126 + $0x28] sm:$0xff]
                %1139 = vst [vmem:[%s1127 + $0x28] sm:$0xff] %v1138
                %v1140 = vld [vmem:[%s1126 + $0x30] sm:$0xff]
                %1141 = vst [vmem:[%s1127 + $0x30] sm:$0xff] %v1140
                %v1142 = vld [vmem:[%s1126 + $0x38] sm:$0xff]
                %1143 = vst [vmem:[%s1127 + $0x38] sm:$0xff] %v1142
                %v1144 = vld [vmem:[%s1126 + $0x40] sm:$0xff]
                %1145 = vst [vmem:[%s1127 + $0x40] sm:$0xff] %v1144
                %v1146 = vld [vmem:[%s1126 + $0x48] sm:$0xff]
                %1147 = vst [vmem:[%s1127 + $0x48] sm:$0xff] %v1146
                %v1148 = vld [vmem:[%s1126 + $0x50] sm:$0xff]
                %1149 = vst [vmem:[%s1127 + $0x50] sm:$0xff] %v1148
                %v1150 = vld [vmem:[%s1126 + $0x58] sm:$0xff]
                %1151 = vst [vmem:[%s1127 + $0x58] sm:$0xff] %v1150
                %v1152 = vld [vmem:[%s1126 + $0x60] sm:$0xff]
                %1153 = vst [vmem:[%s1127 + $0x60] sm:$0xff] %v1152
                %v1154 = vld [vmem:[%s1126 + $0x68] sm:$0xff]
                %1155 = vst [vmem:[%s1127 + $0x68] sm:$0xff] %v1154
                %v1156 = vld [vmem:[%s1126 + $0x70] sm:$0xff]
                %1157 = vst [vmem:[%s1127 + $0x70] sm:$0xff] %v1156
                %v1158 = vld [vmem:[%s1126 + $0x78] sm:$0xff]
                %1159 = vst [vmem:[%s1127 + $0x78] sm:$0xff] %v1158
                %v1160 = vld [vmem:[%s1126 + $0x80] sm:$0xff]
                %1161 = vst [vmem:[%s1127 + $0x80] sm:$0xff] %v1160
                %v1162 = vld [vmem:[%s1126 + $0x88] sm:$0xff]
                %1163 = vst [vmem:[%s1127 + $0x88] sm:$0xff] %v1162
                %v1164 = vld [vmem:[%s1126 + $0x90] sm:$0xff]
                %1165 = vst [vmem:[%s1127 + $0x90] sm:$0xff] %v1164
                %v1166 = vld [vmem:[%s1126 + $0x98] sm:$0xff]
                %1167 = vst [vmem:[%s1127 + $0x98] sm:$0xff] %v1166
                %v1168 = vld [vmem:[%s1126 + $0xa0] sm:$0xff]
                %1169 = vst [vmem:[%s1127 + $0xa0] sm:$0xff] %v1168
                %v1170 = vld [vmem:[%s1126 + $0xa8] sm:$0xff]
                %1171 = vst [vmem:[%s1127 + $0xa8] sm:$0xff] %v1170
                %v1172 = vld [vmem:[%s1126 + $0xb0] sm:$0xff]
                %1173 = vst [vmem:[%s1127 + $0xb0] sm:$0xff] %v1172
                %v1174 = vld [vmem:[%s1126 + $0xb8] sm:$0xff]
                %1175 = vst [vmem:[%s1127 + $0xb8] sm:$0xff] %v1174
                %v1176 = vld [vmem:[%s1126 + $0xc0] sm:$0xff]
                %1177 = vst [vmem:[%s1127 + $0xc0] sm:$0xff] %v1176
                %v1178 = vld [vmem:[%s1126 + $0xc8] sm:$0xff]
                %1179 = vst [vmem:[%s1127 + $0xc8] sm:$0xff] %v1178
                %v1180 = vld [vmem:[%s1126 + $0xd0] sm:$0xff]
                %1181 = vst [vmem:[%s1127 + $0xd0] sm:$0xff] %v1180
                %v1182 = vld [vmem:[%s1126 + $0xd8] sm:$0xff]
                %1183 = vst [vmem:[%s1127 + $0xd8] sm:$0xff] %v1182
                %v1184 = vld [vmem:[%s1126 + $0xe0] sm:$0xff]
                %1185 = vst [vmem:[%s1127 + $0xe0] sm:$0xff] %v1184
                %v1186 = vld [vmem:[%s1126 + $0xe8] sm:$0xff]
                %1187 = vst [vmem:[%s1127 + $0xe8] sm:$0xff] %v1186
                %v1188 = vld [vmem:[%s1126 + $0xf0] sm:$0xff]
                %1189 = vst [vmem:[%s1127 + $0xf0] sm:$0xff] %v1188
                %v1190 = vld [vmem:[%s1126 + $0xf8] sm:$0xff]
                %1191 = vst [vmem:[%s1127 + $0xf8] sm:$0xff] %v1190
                %s1192 = sadd.s32 1, %s1125
                %p1193 = scmp.ge.s32.totalorder %s1192, %s1118
                %s1194 = scalar_select %p1193, 0, %s1192
                %s1195 = smul.u32 %s1194, 256
                %s1196 = smul.u32 %s1194, 256
                %s1197 = scalar_lea.vmem %s1098, %s1195 [#allocation3]
                %s1198 = scalar_lea.vmem %s1109, %s1196
              $region69: #{_pta_forward_impl.1} parent=63 // loop_footer
                %s1122 = sadd.s32 %s1120, 1
              $region70: #{_pta_forward_impl.1} parent=63 // loop_footer_branch
                %1119 = sbr.rel target = $region66
              $region71: #{_pta_forward_impl.1} parent=63 // loop_exit
                _
              %s1199 = sshrl.u32 %s1105, 5
              %s1200 = sand.u32 %s1105, 31
              %s1201 = smul.u32 %s1199, 32
              %s1202 = smul.u32 8, %s1201
              %s1203 = scalar_lea.vmem %s1098, %s1202 [#allocation3]
              %s1204 = smul.u32 8, %s1201
              %s1205 = scalar_lea.vmem %s1109, %s1204
              // While loop
              $region72: #{_pta_forward_impl.1} parent=63 // loop_pre_header
                _
              $region73: #{_pta_forward_impl.1} parent=63 // loop_header
                %s1207 = sphi 0, %s1209
                %p1208 = scmp.ge.s32.totalorder %s1207, %s1200
                %s1212 = sphi 0, %s1219
                %s1213 = sphi %s1203, %s1222
                %s1214 = sphi %s1205, %s1223
              $region74: #{_pta_forward_impl.1} parent=63 // loop_header_branch
                %1211 = sbr.rel (%p1208) target = $region78
              $region75: #{_pta_forward_impl.1} parent=63 // loop_body
                %v1215 = vld [vmem:[%s1213] sm:$0xff]
                %1216 = vst [vmem:[%s1214] sm:$0xff] %v1215
                %s1217 = sadd.s32 1, %s1212
                %p1218 = scmp.ge.s32.totalorder %s1217, %s1200
                %s1219 = scalar_select %p1218, 0, %s1217
                %s1220 = smul.u32 %s1219, 8
                %s1221 = smul.u32 %s1219, 8
                %s1222 = scalar_lea.vmem %s1203, %s1220 [#allocation3]
                %s1223 = scalar_lea.vmem %s1205, %s1221
              $region76: #{_pta_forward_impl.1} parent=63 // loop_footer
                %s1209 = sadd.s32 %s1207, 1
              $region77: #{_pta_forward_impl.1} parent=63 // loop_footer_branch
                %1206 = sbr.rel target = $region73
              $region78: #{_pta_forward_impl.1} parent=63 // loop_exit
                _
            $region64: #{_pta_forward_impl.1} parent=55 // pred_fallthru
              _
          $region56: #{_pta_forward_impl.1} parent=51 // pred_fallthru
            _
          %1334 = vnop
        $region52: #{_pta_forward_impl.1} parent=39 // pred_fallthru
          _
      $region40: #{_pta_forward_impl.1} parent=5 // pred_fallthru
        _
      %p1335 = scmp.le.s32.totalorder 2, %s11
      // Predicated region
      $region101: #{_pta_forward_impl.1} parent=5 // pred_check
        %p1336 = pneg %p1335
      $region102: #{_pta_forward_impl.1} parent=5 // pred_check_branch
        %1338 = sbr.rel (%p1336) target = $region104
      $region103: #{_pta_forward_impl.1} parent=5 // pred_region
        %s1339 = ssub.s32 %s11, 2
        // Predicated region
        $region105: #{_pta_forward_impl.1} parent=103 // pred_check
          %p1340 = pneg %p164
        $region106: #{_pta_forward_impl.1} parent=103 // pred_check_branch
          %1342 = sbr.rel (%p1340) target = $region108
        $region107: #{_pta_forward_impl.1} parent=103 // pred_region
          %s1343 = sand.u32 %s149, 1
          %s1344 = sand.u32 %s149, 1
          %s1345 = smul.addr %s1344, 256
          %s1346 = scalar_lea.vmem [#allocation3], %s1345
        $region108: #{_pta_forward_impl.1} parent=103 // pred_fallthru
          _
      $region104: #{_pta_forward_impl.1} parent=5 // pred_fallthru
        _
    $region6: #{_pta_forward_impl.1} parent=1 // loop_footer
      %s15 = sadd.s32 1, %s11
    $region7: #{_pta_forward_impl.1} parent=1 // loop_footer_branch
      %10 = sbr.rel target = $region3
    $region8: #{_pta_forward_impl.1} parent=1 // loop_exit
      _

</llo_original>
